<compile_context>
chip_gen: v6e
topology: v6e:2x2x1
jax: 0.10.0
libtpu: 0.0.40
codegen_flags: <defaults>
</compile_context>

<pallas_src>
import jax
import jax.numpy as jnp
from jax.experimental import pallas as pl
from jax.experimental.pallas import tpu as pltpu

# ---- synthetic hyperparameters (module __init__ args) ------------------------
NUM_LAYERS    = 1          # unused by forward
CONTEXT       = 2
EMB_DIM       = 4
HIDDEN_DIM    = 32
VOCAB_SIZE    = 50
TAGSET_SIZE   = 5
DROPOUT_P     = 0.1        # eval mode -> identity
BIDIRECTIONAL = False      # unused by forward

IN_CHANNEL  = CONTEXT * EMB_DIM                       # 8
W_SPATIAL   = 9                                       # 1xW map; two maxpool(3) -> 1x1
W1O         = W_SPATIAL // 3                          # width after maxpool1 (=3)
N_TOKENS    = 64
SEQ_PER_TOK = (IN_CHANNEL * W_SPATIAL) // EMB_DIM     # 18 ids per position
OUT_PAD     = 128                                     # lane-dense padded tag dim
TM_MAX      = 512                                     # max rows (tokens) per grid block

# hidden2tag(hidden_dim) only makes sense if the final feature map is 1x1, i.e. the
# two stride-3 pools collapse W=9 completely (the kernel fuses maxpool2 as a running
# max over the W1O == 3 conv2 output positions).
assert W_SPATIAL % 3 == 0 and W1O == 3


# ------------------------------ Pallas kernel --------------------------------
def cnn_tagger_kernel(slab1_ref, w1_ref, b1_ref, w2_ref, b2_ref, wl_ref, bl_ref,
                      o_ref):
    wdim, tm, c3 = slab1_ref.shape          # (W, TM, 3*C_in), position-major
    hid = w1_ref.shape[1]
    w1o = wdim // 3

    # ---- conv1 + bias + relu: one im2col MXU matmul, M = W*TM ----
    # The flatten merges the leading W dim over an 8-aligned sublane dim
    # (tm % 8 == 0), so it is layout-preserving.  Operands are cast to bf16 for the
    # MXU; accumulation and all elementwise math stay f32 (v5e VPU has no bf16 ALUs).
    slab1 = slab1_ref[...].reshape(wdim * tm, c3)
    h1 = jnp.dot(slab1.astype(jnp.bfloat16), w1_ref[...],
                 preferred_element_type=jnp.float32) + b1_ref[...]
    h1 = jnp.maximum(h1, 0.0).reshape(wdim, tm, hid)

    # ---- maxpool1 ((1,3), stride 3 along W): elementwise VPU max of whole slabs ----
    p1 = [jnp.maximum(jnp.maximum(h1[3 * j], h1[3 * j + 1]), h1[3 * j + 2])
          for j in range(w1o)]                                    # w1o x (TM, HID)

    # ---- conv2(pad=1) + bias + relu, fused with maxpool2 ----
    # Zero halo = two in-register zero tiles (no scratch round-trip).  One
    # (TM, 3*HID) @ (3*HID, HID) matmul per output position; the running elementwise
    # max over the w1o == 3 positions IS maxpool2 (a single (1,3) window remains).
    zero = jnp.zeros((tm, hid), jnp.float32)
    padded = [zero] + p1 + [zero]
    p2 = None
    for wi in range(w1o):
        x2 = jnp.concatenate(padded[wi:wi + 3], axis=-1)          # (TM, 3*HID)
        h2 = jnp.dot(x2.astype(jnp.bfloat16), w2_ref[...],
                     preferred_element_type=jnp.float32) + b2_ref[...]
        h2 = jnp.maximum(h2, 0.0)
        p2 = h2 if p2 is None else jnp.maximum(p2, h2)

    # ---- flatten (HIDx1x1 -> HID) + dropout (eval: identity) + hidden2tag ----
    # Weights/bias are zero-padded to 128 lanes -> one unmasked (TM, 128) store.
    # TODO(synk): training-mode dropout omitted; pltpu.prng_random_bits could provide it.
    o_ref[...] = jnp.dot(p2.astype(jnp.bfloat16), wl_ref[...],
                         preferred_element_type=jnp.float32) + bl_ref[...]


# ------------------------------- tiling helpers -------------------------------
def _round_up(x, m):
    return -(-x // m) * m


def _choose_tiling(n):
    """Rows (tokens) per grid block and the padded row count.

    Large blocks amortize the ~0.35us/step grid overhead and fill the MXU; the
    block count is kept >= 2 where possible so v7x's two TensorCores both get work
    via the 'parallel' grid axis (v5e/v6e have a single TC and just want max TM).
    """
    n8 = _round_up(max(n, 1), 8)
    if n8 <= 8:
        tm = 8                               # a single tiny block; nothing to split
    elif n8 < 2 * TM_MAX:
        tm = _round_up(n8, 16) // 2          # two blocks, tm is a multiple of 8
    else:
        tm = TM_MAX
    n_pad = _round_up(n8, tm)
    return tm, n_pad


# ------------------------------- wrapper --------------------------------------
@jax.jit
def cnn_tagger_forward(sentence, packed):
    """sentence: (N, SEQ_PER_TOK) int32 token ids; packed: output of prepare_params()."""
    n = sentence.shape[0]
    tm, n_pad = _choose_tiling(n)
    grid = (n_pad // tm,)

    # Glue (fused by XLA under this jit into the op that produces the im2col slab):
    # embedding gather, the exact PyTorch .view(n, in_channel, 1, -1), transpose to
    # position-major NWC, W zero-halo, conv1 im2col.
    # TODO(synk): the gather itself could move in-kernel (ids + 800 B table as
    # inputs) to shave the last wrapper dispatches; left as XLA-fused glue.
    embeds = jnp.take(packed["emb"], sentence, axis=0)                    # (N, L, E)
    x = embeds.reshape(n, IN_CHANNEL, W_SPATIAL)                          # (N, C, W)  H=1 squeezed
    x = jnp.transpose(x, (2, 0, 1)).astype(jnp.float32)                   # (W, N, C)  position-major
    xw = jnp.pad(x, ((1, 1), (0, n_pad - n), (0, 0)))                     # (W+2, Npad, C)
    slab1 = jnp.concatenate([xw[k:k + W_SPATIAL] for k in range(3)],
                            axis=-1)                                      # (W, Npad, 3*C)

    out = pl.pallas_call(
        cnn_tagger_kernel,
        out_shape=jax.ShapeDtypeStruct((n_pad, OUT_PAD), jnp.float32),
        grid=grid,
        in_specs=[
            pl.BlockSpec((W_SPATIAL, tm, 3 * IN_CHANNEL), lambda i: (0, i, 0)),
            pl.BlockSpec((3 * IN_CHANNEL, HIDDEN_DIM),    lambda i: (0, 0)),
            pl.BlockSpec((1, HIDDEN_DIM),                 lambda i: (0, 0)),
            pl.BlockSpec((3 * HIDDEN_DIM, HIDDEN_DIM),    lambda i: (0, 0)),
            pl.BlockSpec((1, HIDDEN_DIM),                 lambda i: (0, 0)),
            pl.BlockSpec((HIDDEN_DIM, OUT_PAD),           lambda i: (0, 0)),
            pl.BlockSpec((1, OUT_PAD),                    lambda i: (0, 0)),
        ],
        out_specs=pl.BlockSpec((tm, OUT_PAD), lambda i: (i, 0)),
        compiler_params=pltpu.CompilerParams(dimension_semantics=("parallel",)),
    )(slab1, packed["w1"], packed["b1"], packed["w2"], packed["b2"],
      packed["wl"], packed["bl"])
    return out[:n, :TAGSET_SIZE]


# --------------- one-time parameter preparation (hoisted repacking) -----------
def prepare_params(p):
    """Repack PyTorch-layout parameters once; reuse for every forward call.

    Only the middle kernel row (kh=1) of each 3x3 Conv2d is active for an H=1,
    padding=1 input, so just that row is packed in im2col order: row k*C + c of the
    packed matrix multiplies input tap (w-1+k), channel c.  Matmul weights are bf16
    (MXU-native on v6e/v7x); biases stay f32 (added after f32 accumulation).
    """
    w1k = jnp.concatenate([p["w1"][:, :, 1, k].T for k in range(3)], axis=0)  # (3*C_in, HID)
    w2k = jnp.concatenate([p["w2"][:, :, 1, k].T for k in range(3)], axis=0)  # (3*HID, HID)
    wl_pad = jnp.zeros((HIDDEN_DIM, OUT_PAD), jnp.float32).at[:, :TAGSET_SIZE].set(p["wl"].T)
    bl_pad = jnp.zeros((1, OUT_PAD), jnp.float32).at[0, :TAGSET_SIZE].set(p["bl"])
    return dict(
        emb=p["emb"].astype(jnp.float32),
        w1=w1k.astype(jnp.bfloat16), b1=p["b1"].reshape(1, -1).astype(jnp.float32),
        w2=w2k.astype(jnp.bfloat16), b2=p["b2"].reshape(1, -1).astype(jnp.float32),
        wl=wl_pad.astype(jnp.bfloat16), bl=bl_pad,
    )


# ------------------------- deterministic parameter init -----------------------
def init_params(key):
    ks = jax.random.split(key, 7)

    def uni(k, shape, fan_in):
        bound = 1.0 / jnp.sqrt(jnp.float32(fan_in))
        return jax.random.uniform(k, shape, jnp.float32, -bound, bound)

    return dict(
        emb=jax.random.normal(ks[0], (VOCAB_SIZE, EMB_DIM), jnp.float32),
        w1=uni(ks[1], (HIDDEN_DIM, IN_CHANNEL, 3, 3), IN_CHANNEL * 9),
        b1=uni(ks[2], (HIDDEN_DIM,), IN_CHANNEL * 9),
        w2=uni(ks[3], (HIDDEN_DIM, HIDDEN_DIM, 3, 3), HIDDEN_DIM * 9),
        b2=uni(ks[4], (HIDDEN_DIM,), HIDDEN_DIM * 9),
        wl=uni(ks[5], (TAGSET_SIZE, HIDDEN_DIM), HIDDEN_DIM),
        bl=uni(ks[6], (TAGSET_SIZE,), HIDDEN_DIM),
    )


# ----------------------- pure-JAX reference (correctness) ---------------------
def ref_forward(sentence, p, matmul_dtype=jnp.float32):
    """Pure-JAX reference with PyTorch CNNTagger semantics (H=1 map, eval dropout).

    matmul_dtype=jnp.bfloat16 models the kernel's bf16 MXU operands (accumulation
    stays f32) so the kernel can also be checked tightly against the same rounding.
    """
    n = sentence.shape[0]
    hp = jax.lax.Precision.HIGHEST
    md = matmul_dtype
    emb = jnp.take(p["emb"], sentence, axis=0)
    x = emb.reshape(n, IN_CHANNEL, 1, W_SPATIAL)[:, :, 0, :].astype(jnp.float32)  # (N,C,W)
    xw = jnp.pad(x, ((0, 0), (0, 0), (1, 1)))
    win1 = jnp.stack([xw[:, :, k:k + W_SPATIAL] for k in range(3)], axis=-1)      # (N,C,W,3)
    h1 = jnp.einsum("ncwk,ock->now", win1.astype(md), p["w1"][:, :, 1, :].astype(md),
                    precision=hp, preferred_element_type=jnp.float32) \
        + p["b1"][None, :, None]
    h1 = jnp.maximum(h1, 0.0)
    p1 = h1.reshape(n, HIDDEN_DIM, W1O, 3).max(axis=-1)                           # (N,HID,W1O)
    p1w = jnp.pad(p1, ((0, 0), (0, 0), (1, 1)))
    win2 = jnp.stack([p1w[:, :, k:k + W1O] for k in range(3)], axis=-1)           # (N,HID,W1O,3)
    h2 = jnp.einsum("ncwk,ock->now", win2.astype(md), p["w2"][:, :, 1, :].astype(md),
                    precision=hp, preferred_element_type=jnp.float32) \
        + p["b2"][None, :, None]
    h2 = jnp.maximum(h2, 0.0)
    p2 = h2.max(axis=-1)                                                          # (N,HID)
    return jnp.dot(p2.astype(md), p["wl"].T.astype(md),
                   precision=hp, preferred_element_type=jnp.float32) + p["bl"]


if __name__ == "__main__":
    key = jax.random.PRNGKey(0)
    pkey, skey = jax.random.split(key)
    params = init_params(pkey)
    packed = prepare_params(params)          # one-time repacking, reused per call
    sentence = jax.random.randint(skey, (N_TOKENS, SEQ_PER_TOK), 0, VOCAB_SIZE, jnp.int32)

    tag_scores = jax.block_until_ready(cnn_tagger_forward(sentence, packed))

    assert tag_scores.shape == (N_TOKENS, TAGSET_SIZE)
    assert bool(jnp.all(jnp.isfinite(tag_scores)))

    # Tight structural check: same math with bf16 MXU operands / f32 accumulation.
    ref_bf16 = jax.block_until_ready(ref_forward(sentence, params, jnp.bfloat16))
    assert bool(jnp.allclose(tag_scores, ref_bf16, atol=1e-3, rtol=1e-3)), \
        "mismatch vs bf16-operand reference"

    # Module-semantics check vs the f32 reference; tolerance covers bf16 operand
    # rounding inside the three matmuls (accumulation is f32 everywhere).
    ref_f32 = jax.block_until_ready(ref_forward(sentence, params, jnp.float32))
    assert bool(jnp.allclose(tag_scores, ref_f32, atol=4e-2, rtol=4e-2)), \
        "mismatch vs f32 reference"

    print("KERNEL_OK")
</pallas_src>

<mosaic_0001>
module attributes {stable_mosaic.version = 11 : i64} {
  func.func @cnn_tagger_kernel(%arg0: i32, %arg1: memref<9x32x24xf32, #tpu.memory_space<vmem>>, %arg2: memref<24x32xbf16, #tpu.memory_space<vmem>>, %arg3: memref<1x32xf32, #tpu.memory_space<vmem>>, %arg4: memref<96x32xbf16, #tpu.memory_space<vmem>>, %arg5: memref<1x32xf32, #tpu.memory_space<vmem>>, %arg6: memref<32x128xbf16, #tpu.memory_space<vmem>>, %arg7: memref<1x128xf32, #tpu.memory_space<vmem>>, %arg8: memref<32x128xf32, #tpu.memory_space<vmem>>) attributes {dimension_semantics = [#tpu.dimension_semantics<parallel>], iteration_bounds = array<i64: 2>, scalar_prefetch = 0 : i64, scratch_operands = 0 : i64, tpu.core_type = #tpu.core_type<tc>, window_params = [{transform_indices = @transform_0, window_bounds = array<i64: 9, 32, 24>}, {pipeline_mode = #tpu.pipeline_mode<synchronous>, transform_indices = @transform_1, window_bounds = array<i64: 24, 32>}, {pipeline_mode = #tpu.pipeline_mode<synchronous>, transform_indices = @transform_2, window_bounds = array<i64: 1, 32>}, {pipeline_mode = #tpu.pipeline_mode<synchronous>, transform_indices = @transform_3, window_bounds = array<i64: 96, 32>}, {pipeline_mode = #tpu.pipeline_mode<synchronous>, transform_indices = @transform_4, window_bounds = array<i64: 1, 32>}, {pipeline_mode = #tpu.pipeline_mode<synchronous>, transform_indices = @transform_5, window_bounds = array<i64: 32, 128>}, {pipeline_mode = #tpu.pipeline_mode<synchronous>, transform_indices = @transform_6, window_bounds = array<i64: 1, 128>}, {transform_indices = @transform_7, window_bounds = array<i64: 32, 128>}]} {
    %c0 = arith.constant 0 : index
    %c0_0 = arith.constant 0 : index
    %c0_1 = arith.constant 0 : index
    %0 = vector.load %arg1[%c0, %c0_0, %c0_1] : memref<9x32x24xf32, #tpu.memory_space<vmem>>, vector<9x32x24xf32>
    %1 = vector.shape_cast %0 : vector<9x32x24xf32> to vector<288x24xf32>
    %2 = arith.truncf %1 : vector<288x24xf32> to vector<288x24xbf16>
    %c0_2 = arith.constant 0 : index
    %c0_3 = arith.constant 0 : index
    %3 = vector.load %arg2[%c0_2, %c0_3] : memref<24x32xbf16, #tpu.memory_space<vmem>>, vector<24x32xbf16>
    %cst = arith.constant dense<0.000000e+00> : vector<288x32xf32>
    %4 = tpu.matmul %2, %3, %cst {dimension_numbers = #tpu.dot_dimension_numbers<[1], [0], [0], [1], [0, 0, 1, 1], [], []>} : vector<288x24xbf16>, vector<24x32xbf16>, vector<288x32xf32> -> vector<288x32xf32>
    %c0_4 = arith.constant 0 : index
    %c0_5 = arith.constant 0 : index
    %5 = vector.load %arg3[%c0_4, %c0_5] : memref<1x32xf32, #tpu.memory_space<vmem>>, vector<1x32xf32>
    %6 = vector.broadcast %5 : vector<1x32xf32> to vector<288x32xf32>
    %7 = arith.addf %4, %6 : vector<288x32xf32>
    %cst_6 = arith.constant 0.000000e+00 : f32
    %8 = vector.broadcast %cst_6 : f32 to vector<288x32xf32>
    %9 = arith.maximumf %7, %8 : vector<288x32xf32>
    %10 = vector.shape_cast %9 : vector<288x32xf32> to vector<9x32x32xf32>
    %11 = vector.extract_strided_slice %10 {offsets = [0, 0, 0], sizes = [1, 32, 32], strides = [1, 1, 1]} : vector<9x32x32xf32> to vector<1x32x32xf32>
    %12 = vector.shape_cast %11 : vector<1x32x32xf32> to vector<32x32xf32>
    %13 = vector.extract_strided_slice %10 {offsets = [1, 0, 0], sizes = [1, 32, 32], strides = [1, 1, 1]} : vector<9x32x32xf32> to vector<1x32x32xf32>
    %14 = vector.shape_cast %13 : vector<1x32x32xf32> to vector<32x32xf32>
    %15 = arith.maximumf %12, %14 : vector<32x32xf32>
    %16 = vector.extract_strided_slice %10 {offsets = [2, 0, 0], sizes = [1, 32, 32], strides = [1, 1, 1]} : vector<9x32x32xf32> to vector<1x32x32xf32>
    %17 = vector.shape_cast %16 : vector<1x32x32xf32> to vector<32x32xf32>
    %18 = arith.maximumf %15, %17 : vector<32x32xf32>
    %19 = vector.extract_strided_slice %10 {offsets = [3, 0, 0], sizes = [1, 32, 32], strides = [1, 1, 1]} : vector<9x32x32xf32> to vector<1x32x32xf32>
    %20 = vector.shape_cast %19 : vector<1x32x32xf32> to vector<32x32xf32>
    %21 = vector.extract_strided_slice %10 {offsets = [4, 0, 0], sizes = [1, 32, 32], strides = [1, 1, 1]} : vector<9x32x32xf32> to vector<1x32x32xf32>
    %22 = vector.shape_cast %21 : vector<1x32x32xf32> to vector<32x32xf32>
    %23 = arith.maximumf %20, %22 : vector<32x32xf32>
    %24 = vector.extract_strided_slice %10 {offsets = [5, 0, 0], sizes = [1, 32, 32], strides = [1, 1, 1]} : vector<9x32x32xf32> to vector<1x32x32xf32>
    %25 = vector.shape_cast %24 : vector<1x32x32xf32> to vector<32x32xf32>
    %26 = arith.maximumf %23, %25 : vector<32x32xf32>
    %27 = vector.extract_strided_slice %10 {offsets = [6, 0, 0], sizes = [1, 32, 32], strides = [1, 1, 1]} : vector<9x32x32xf32> to vector<1x32x32xf32>
    %28 = vector.shape_cast %27 : vector<1x32x32xf32> to vector<32x32xf32>
    %29 = vector.extract_strided_slice %10 {offsets = [7, 0, 0], sizes = [1, 32, 32], strides = [1, 1, 1]} : vector<9x32x32xf32> to vector<1x32x32xf32>
    %30 = vector.shape_cast %29 : vector<1x32x32xf32> to vector<32x32xf32>
    %31 = arith.maximumf %28, %30 : vector<32x32xf32>
    %32 = vector.extract_strided_slice %10 {offsets = [8, 0, 0], sizes = [1, 32, 32], strides = [1, 1, 1]} : vector<9x32x32xf32> to vector<1x32x32xf32>
    %33 = vector.shape_cast %32 : vector<1x32x32xf32> to vector<32x32xf32>
    %34 = arith.maximumf %31, %33 : vector<32x32xf32>
    %cst_7 = arith.constant 0.000000e+00 : f32
    %35 = vector.broadcast %cst_7 : f32 to vector<32x32xf32>
    %36 = tpu.concatenate %35, %18, %26 in 1 : vector<32x32xf32>, vector<32x32xf32>, vector<32x32xf32> -> vector<32x96xf32>
    %37 = arith.truncf %36 : vector<32x96xf32> to vector<32x96xbf16>
    %c0_8 = arith.constant 0 : index
    %c0_9 = arith.constant 0 : index
    %38 = vector.load %arg4[%c0_8, %c0_9] : memref<96x32xbf16, #tpu.memory_space<vmem>>, vector<96x32xbf16>
    %cst_10 = arith.constant dense<0.000000e+00> : vector<32x32xf32>
    %39 = tpu.matmul %37, %38, %cst_10 {dimension_numbers = #tpu.dot_dimension_numbers<[1], [0], [0], [1], [0, 0, 1, 1], [], []>} : vector<32x96xbf16>, vector<96x32xbf16>, vector<32x32xf32> -> vector<32x32xf32>
    %c0_11 = arith.constant 0 : index
    %c0_12 = arith.constant 0 : index
    %40 = vector.load %arg5[%c0_11, %c0_12] : memref<1x32xf32, #tpu.memory_space<vmem>>, vector<1x32xf32>
    %41 = vector.broadcast %40 : vector<1x32xf32> to vector<32x32xf32>
    %42 = arith.addf %39, %41 : vector<32x32xf32>
    %cst_13 = arith.constant 0.000000e+00 : f32
    %43 = vector.broadcast %cst_13 : f32 to vector<32x32xf32>
    %44 = arith.maximumf %42, %43 : vector<32x32xf32>
    %45 = tpu.concatenate %18, %26, %34 in 1 : vector<32x32xf32>, vector<32x32xf32>, vector<32x32xf32> -> vector<32x96xf32>
    %46 = arith.truncf %45 : vector<32x96xf32> to vector<32x96xbf16>
    %c0_14 = arith.constant 0 : index
    %c0_15 = arith.constant 0 : index
    %47 = vector.load %arg4[%c0_14, %c0_15] : memref<96x32xbf16, #tpu.memory_space<vmem>>, vector<96x32xbf16>
    %cst_16 = arith.constant dense<0.000000e+00> : vector<32x32xf32>
    %48 = tpu.matmul %46, %47, %cst_16 {dimension_numbers = #tpu.dot_dimension_numbers<[1], [0], [0], [1], [0, 0, 1, 1], [], []>} : vector<32x96xbf16>, vector<96x32xbf16>, vector<32x32xf32> -> vector<32x32xf32>
    %c0_17 = arith.constant 0 : index
    %c0_18 = arith.constant 0 : index
    %49 = vector.load %arg5[%c0_17, %c0_18] : memref<1x32xf32, #tpu.memory_space<vmem>>, vector<1x32xf32>
    %50 = vector.broadcast %49 : vector<1x32xf32> to vector<32x32xf32>
    %51 = arith.addf %48, %50 : vector<32x32xf32>
    %cst_19 = arith.constant 0.000000e+00 : f32
    %52 = vector.broadcast %cst_19 : f32 to vector<32x32xf32>
    %53 = arith.maximumf %51, %52 : vector<32x32xf32>
    %54 = arith.maximumf %44, %53 : vector<32x32xf32>
    %55 = tpu.concatenate %26, %34, %35 in 1 : vector<32x32xf32>, vector<32x32xf32>, vector<32x32xf32> -> vector<32x96xf32>
    %56 = arith.truncf %55 : vector<32x96xf32> to vector<32x96xbf16>
    %c0_20 = arith.constant 0 : index
    %c0_21 = arith.constant 0 : index
    %57 = vector.load %arg4[%c0_20, %c0_21] : memref<96x32xbf16, #tpu.memory_space<vmem>>, vector<96x32xbf16>
    %cst_22 = arith.constant dense<0.000000e+00> : vector<32x32xf32>
    %58 = tpu.matmul %56, %57, %cst_22 {dimension_numbers = #tpu.dot_dimension_numbers<[1], [0], [0], [1], [0, 0, 1, 1], [], []>} : vector<32x96xbf16>, vector<96x32xbf16>, vector<32x32xf32> -> vector<32x32xf32>
    %c0_23 = arith.constant 0 : index
    %c0_24 = arith.constant 0 : index
    %59 = vector.load %arg5[%c0_23, %c0_24] : memref<1x32xf32, #tpu.memory_space<vmem>>, vector<1x32xf32>
    %60 = vector.broadcast %59 : vector<1x32xf32> to vector<32x32xf32>
    %61 = arith.addf %58, %60 : vector<32x32xf32>
    %cst_25 = arith.constant 0.000000e+00 : f32
    %62 = vector.broadcast %cst_25 : f32 to vector<32x32xf32>
    %63 = arith.maximumf %61, %62 : vector<32x32xf32>
    %64 = arith.maximumf %54, %63 : vector<32x32xf32>
    %65 = arith.truncf %64 : vector<32x32xf32> to vector<32x32xbf16>
    %c0_26 = arith.constant 0 : index
    %c0_27 = arith.constant 0 : index
    %66 = vector.load %arg6[%c0_26, %c0_27] : memref<32x128xbf16, #tpu.memory_space<vmem>>, vector<32x128xbf16>
    %cst_28 = arith.constant dense<0.000000e+00> : vector<32x128xf32>
    %67 = tpu.matmul %65, %66, %cst_28 {dimension_numbers = #tpu.dot_dimension_numbers<[1], [0], [0], [1], [0, 0, 1, 1], [], []>} : vector<32x32xbf16>, vector<32x128xbf16>, vector<32x128xf32> -> vector<32x128xf32>
    %c0_29 = arith.constant 0 : index
    %c0_30 = arith.constant 0 : index
    %68 = vector.load %arg7[%c0_29, %c0_30] : memref<1x128xf32, #tpu.memory_space<vmem>>, vector<1x128xf32>
    %69 = vector.broadcast %68 : vector<1x128xf32> to vector<32x128xf32>
    %70 = arith.addf %67, %69 : vector<32x128xf32>
    %c0_31 = arith.constant 0 : index
    %c0_32 = arith.constant 0 : index
    %71 = vector.load %arg8[%c0_31, %c0_32] : memref<32x128xf32, #tpu.memory_space<vmem>>, vector<32x128xf32>
    tpu.vector_store %arg8[%c0_31, %c0_32], %70 {strides = array<i32>} : memref<32x128xf32, #tpu.memory_space<vmem>>, vector<32x128xf32>,
    return
  }
  func.func @transform_0(%arg0: i32) -> (i32, i32, i32) {
    %c0_i32 = arith.constant 0 : i32
    %c0_i32_0 = arith.constant 0 : i32
    %c0_i32_1 = arith.constant 0 : i32
    return %c0_i32, %arg0, %c0_i32_0 : i32, i32, i32
  }
  func.func @transform_1(%arg0: i32) -> (i32, i32) {
    %c0_i32 = arith.constant 0 : i32
    %c0_i32_0 = arith.constant 0 : i32
    %c0_i32_1 = arith.constant 0 : i32
    return %c0_i32, %c0_i32_0 : i32, i32
  }
  func.func @transform_2(%arg0: i32) -> (i32, i32) {
    %c0_i32 = arith.constant 0 : i32
    %c0_i32_0 = arith.constant 0 : i32
    %c0_i32_1 = arith.constant 0 : i32
    return %c0_i32, %c0_i32_0 : i32, i32
  }
  func.func @transform_3(%arg0: i32) -> (i32, i32) {
    %c0_i32 = arith.constant 0 : i32
    %c0_i32_0 = arith.constant 0 : i32
    %c0_i32_1 = arith.constant 0 : i32
    return %c0_i32, %c0_i32_0 : i32, i32
  }
  func.func @transform_4(%arg0: i32) -> (i32, i32) {
    %c0_i32 = arith.constant 0 : i32
    %c0_i32_0 = arith.constant 0 : i32
    %c0_i32_1 = arith.constant 0 : i32
    return %c0_i32, %c0_i32_0 : i32, i32
  }
  func.func @transform_5(%arg0: i32) -> (i32, i32) {
    %c0_i32 = arith.constant 0 : i32
    %c0_i32_0 = arith.constant 0 : i32
    %c0_i32_1 = arith.constant 0 : i32
    return %c0_i32, %c0_i32_0 : i32, i32
  }
  func.func @transform_6(%arg0: i32) -> (i32, i32) {
    %c0_i32 = arith.constant 0 : i32
    %c0_i32_0 = arith.constant 0 : i32
    %c0_i32_1 = arith.constant 0 : i32
    return %c0_i32, %c0_i32_0 : i32, i32
  }
  func.func @transform_7(%arg0: i32) -> (i32, i32) {
    %c0_i32 = arith.constant 0 : i32
    %c0_i32_0 = arith.constant 0 : i32
    return %arg0, %c0_i32 : i32, i32
  }
}

</mosaic_0001>

<llo_original>
// kernel: cnn_tagger_forward.1
$region0: #{cnn_tagger_forward.1}
  #allocation0 [shape = 'u32[]', space=smem, size = 0x4, offset = 0x4, fixed_abs, tag = 'smem constant byte address 0x4 - core index']
  #allocation1 [shape = 'u32[144,128]{1,0:T(1,128)}', space=vmem, size = 0x12000, scoped, tag = 'internal scratch']
  %s0 = inlined_call_operand.vmem [shape: f32[9,64,24], index: 0, kind: input, shape index: {}]
  %s1 = inlined_call_operand.vmem [shape: bf16[24,32], index: 1, kind: input, shape index: {}]
  %s2 = inlined_call_operand.vmem [shape: f32[1,32], index: 2, kind: input, shape index: {}]
  %s3 = inlined_call_operand.vmem [shape: bf16[96,32], index: 3, kind: input, shape index: {}]
  %s4 = inlined_call_operand.vmem [shape: f32[1,32], index: 4, kind: input, shape index: {}]
  %s5 = inlined_call_operand.vmem [shape: bf16[32,128], index: 5, kind: input, shape index: {}]
  %s6 = inlined_call_operand.vmem [shape: f32[1,128], index: 6, kind: input, shape index: {}]
  %s7 = inlined_call_operand.vmem [shape: f32[64,128], index: 7, kind: output, shape index: {}]
  %s8 = sld [smem:[#allocation0]]
  $region99: #{cnn_tagger_forward.1} parent=0
    _
  %s10 = ssub.s32 1, %s8
  %s11 = scalar_select 0, %s10, %s8
  $region1: #{cnn_tagger_forward.1} parent=0
    #allocation2 [shape = 'u8[294912]{0}', space=vmem, size = 0x48000, scoped, tag = 'input window, operand 0']
    loop: start=0, step=1, limit=4
    $region2: #{cnn_tagger_forward.1} parent=1 // loop_pre_header
      _
    $region3: #{cnn_tagger_forward.1} parent=1 // loop_header
      %s13 = sphi 0, %s17
      %p14 = scmp.ge.s32.totalorder %s13, 4
      %s23 = sphi 0, %s25
      %s26 = sphi 0, %s23
      %s27 = sphi 0, %s26
      %s43 = sphi 0, %s27
      %s47 = sphi 0, %s47
      %s49 = sphi 0, %s47
      %s50 = sphi 0, %s49
      %s64 = sphi 0, %s50
      %s68 = sphi 0, %s68
      %s70 = sphi 0, %s68
      %s71 = sphi 0, %s70
      %s85 = sphi 0, %s71
      %s89 = sphi 0, %s89
      %s91 = sphi 0, %s89
      %s92 = sphi 0, %s91
      %s106 = sphi 0, %s92
      %s110 = sphi 0, %s110
      %s112 = sphi 0, %s110
      %s113 = sphi 0, %s112
      %s127 = sphi 0, %s113
      %s131 = sphi 0, %s131
      %s133 = sphi 0, %s131
      %s134 = sphi 0, %s133
      %s148 = sphi 0, %s134
      %s152 = sphi 0, %s152
      %s154 = sphi 0, %s152
      %s155 = sphi 0, %s154
      %s169 = sphi 0, %s155
      %s175 = sphi 0, %s177
      %s178 = sphi 0, %s175
      %s179 = sphi 0, %s178
      %s195 = sphi 0, %s179
    $region4: #{cnn_tagger_forward.1} parent=1 // loop_header_branch
      %16 = sbr.rel (%p14) target = $region8
    $region5: #{cnn_tagger_forward.1} parent=1 // loop_body
      %s18 = ssub.s32 %s13, 1
      %s19 = ssub.s32 %s13, 2
      %s20 = sadd.s32 %s13, 1
      %s21 = ssub.s32 %s13, %s20
      %p22 = scmp.eq.s32.totalorder %s21, 0
      %s24 = sadd.s32 %s23, 1
      %s25 = scalar_select %p22, %s23, %s24
      %p28 = pneg %p22
      %p29 = scmp.eq.s32.totalorder %s13, 1
      %p30 = por %p28, %p29
      %p31 = scmp.ne.s32.totalorder %s23, %s26
      %p32 = scmp.eq.s32.totalorder %s13, 0
      %p33 = por %p31, %p32
      %p34 = scmp.ne.s32.totalorder %s23, %s26
      %p35 = scmp.eq.s32.totalorder %s18, 1
      %p36 = por %p34, %p35
      %p37 = scmp.ne.s32.totalorder %s26, %s27
      %p38 = scmp.eq.s32.totalorder %s18, 0
      %p39 = por %p37, %p38
      %p40 = scmp.ne.s32.totalorder %s26, %s27
      %p41 = scmp.eq.s32.totalorder %s19, 1
      %p42 = por %p40, %p41
      %p44 = scmp.ne.s32.totalorder %s27, %s43
      %p45 = scmp.eq.s32.totalorder %s19, 0
      %p46 = por %p44, %p45
      %s48 = sadd.s32 %s47, 1
      %p51 = scmp.eq.s32.totalorder %s13, 1
      %p52 = scmp.ne.s32.totalorder %s47, %s49
      %p53 = scmp.eq.s32.totalorder %s13, 0
      %p54 = por %p52, %p53
      %p55 = scmp.ne.s32.totalorder %s47, %s49
      %p56 = scmp.eq.s32.totalorder %s18, 1
      %p57 = por %p55, %p56
      %p58 = scmp.ne.s32.totalorder %s49, %s50
      %p59 = scmp.eq.s32.totalorder %s18, 0
      %p60 = por %p58, %p59
      %p61 = scmp.ne.s32.totalorder %s49, %s50
      %p62 = scmp.eq.s32.totalorder %s19, 1
      %p63 = por %p61, %p62
      %p65 = scmp.ne.s32.totalorder %s50, %s64
      %p66 = scmp.eq.s32.totalorder %s19, 0
      %p67 = por %p65, %p66
      %s69 = sadd.s32 %s68, 1
      %p72 = scmp.eq.s32.totalorder %s13, 1
      %p73 = scmp.ne.s32.totalorder %s68, %s70
      %p74 = scmp.eq.s32.totalorder %s13, 0
      %p75 = por %p73, %p74
      %p76 = scmp.ne.s32.totalorder %s68, %s70
      %p77 = scmp.eq.s32.totalorder %s18, 1
      %p78 = por %p76, %p77
      %p79 = scmp.ne.s32.totalorder %s70, %s71
      %p80 = scmp.eq.s32.totalorder %s18, 0
      %p81 = por %p79, %p80
      %p82 = scmp.ne.s32.totalorder %s70, %s71
      %p83 = scmp.eq.s32.totalorder %s19, 1
      %p84 = por %p82, %p83
      %p86 = scmp.ne.s32.totalorder %s71, %s85
      %p87 = scmp.eq.s32.totalorder %s19, 0
      %p88 = por %p86, %p87
      %s90 = sadd.s32 %s89, 1
      %p93 = scmp.eq.s32.totalorder %s13, 1
      %p94 = scmp.ne.s32.totalorder %s89, %s91
      %p95 = scmp.eq.s32.totalorder %s13, 0
      %p96 = por %p94, %p95
      %p97 = scmp.ne.s32.totalorder %s89, %s91
      %p98 = scmp.eq.s32.totalorder %s18, 1
      %p99 = por %p97, %p98
      %p100 = scmp.ne.s32.totalorder %s91, %s92
      %p101 = scmp.eq.s32.totalorder %s18, 0
      %p102 = por %p100, %p101
      %p103 = scmp.ne.s32.totalorder %s91, %s92
      %p104 = scmp.eq.s32.totalorder %s19, 1
      %p105 = por %p103, %p104
      %p107 = scmp.ne.s32.totalorder %s92, %s106
      %p108 = scmp.eq.s32.totalorder %s19, 0
      %p109 = por %p107, %p108
      %s111 = sadd.s32 %s110, 1
      %p114 = scmp.eq.s32.totalorder %s13, 1
      %p115 = scmp.ne.s32.totalorder %s110, %s112
      %p116 = scmp.eq.s32.totalorder %s13, 0
      %p117 = por %p115, %p116
      %p118 = scmp.ne.s32.totalorder %s110, %s112
      %p119 = scmp.eq.s32.totalorder %s18, 1
      %p120 = por %p118, %p119
      %p121 = scmp.ne.s32.totalorder %s112, %s113
      %p122 = scmp.eq.s32.totalorder %s18, 0
      %p123 = por %p121, %p122
      %p124 = scmp.ne.s32.totalorder %s112, %s113
      %p125 = scmp.eq.s32.totalorder %s19, 1
      %p126 = por %p124, %p125
      %p128 = scmp.ne.s32.totalorder %s113, %s127
      %p129 = scmp.eq.s32.totalorder %s19, 0
      %p130 = por %p128, %p129
      %s132 = sadd.s32 %s131, 1
      %p135 = scmp.eq.s32.totalorder %s13, 1
      %p136 = scmp.ne.s32.totalorder %s131, %s133
      %p137 = scmp.eq.s32.totalorder %s13, 0
      %p138 = por %p136, %p137
      %p139 = scmp.ne.s32.totalorder %s131, %s133
      %p140 = scmp.eq.s32.totalorder %s18, 1
      %p141 = por %p139, %p140
      %p142 = scmp.ne.s32.totalorder %s133, %s134
      %p143 = scmp.eq.s32.totalorder %s18, 0
      %p144 = por %p142, %p143
      %p145 = scmp.ne.s32.totalorder %s133, %s134
      %p146 = scmp.eq.s32.totalorder %s19, 1
      %p147 = por %p145, %p146
      %p149 = scmp.ne.s32.totalorder %s134, %s148
      %p150 = scmp.eq.s32.totalorder %s19, 0
      %p151 = por %p149, %p150
      %s153 = sadd.s32 %s152, 1
      %p156 = scmp.eq.s32.totalorder %s13, 1
      %p157 = scmp.ne.s32.totalorder %s152, %s154
      %p158 = scmp.eq.s32.totalorder %s13, 0
      %p159 = por %p157, %p158
      %p160 = scmp.ne.s32.totalorder %s152, %s154
      %p161 = scmp.eq.s32.totalorder %s18, 1
      %p162 = por %p160, %p161
      %p163 = scmp.ne.s32.totalorder %s154, %s155
      %p164 = scmp.eq.s32.totalorder %s18, 0
      %p165 = por %p163, %p164
      %p166 = scmp.ne.s32.totalorder %s154, %s155
      %p167 = scmp.eq.s32.totalorder %s19, 1
      %p168 = por %p166, %p167
      %p170 = scmp.ne.s32.totalorder %s155, %s169
      %p171 = scmp.eq.s32.totalorder %s19, 0
      %p172 = por %p170, %p171
      %s173 = ssub.s32 %s13, %s20
      %p174 = scmp.eq.s32.totalorder %s173, 0
      %s176 = sadd.s32 %s175, 1
      %s177 = scalar_select %p174, %s175, %s176
      %p180 = pneg %p174
      %p181 = scmp.eq.s32.totalorder %s13, 1
      %p182 = por %p180, %p181
      %p183 = scmp.ne.s32.totalorder %s175, %s178
      %p184 = scmp.eq.s32.totalorder %s13, 0
      %p185 = por %p183, %p184
      %p186 = scmp.ne.s32.totalorder %s175, %s178
      %p187 = scmp.eq.s32.totalorder %s18, 1
      %p188 = por %p186, %p187
      %p189 = scmp.ne.s32.totalorder %s178, %s179
      %p190 = scmp.eq.s32.totalorder %s18, 0
      %p191 = por %p189, %p190
      %p192 = scmp.ne.s32.totalorder %s178, %s179
      %p193 = scmp.eq.s32.totalorder %s19, 1
      %p194 = por %p192, %p193
      %p196 = scmp.ne.s32.totalorder %s179, %s195
      %p197 = scmp.eq.s32.totalorder %s19, 0
      %p198 = por %p196, %p197
      %p199 = scmp.le.s32.totalorder 1, %s13
      %p200 = scmp.lt.s32.totalorder %s13, 3
      %p201 = pnand %p199, %p200
      %p202 = pneg %p201
      // Predicated region
      $region9: #{cnn_tagger_forward.1} parent=5 // pred_check
        _
      $region10: #{cnn_tagger_forward.1} parent=5 // pred_check_branch
        %204 = sbr.rel (%p201) target = $region12
      $region11: #{cnn_tagger_forward.1} parent=5 // pred_region
        %s205 = ssub.s32 %s13, 1
        // Predicated region
        $region13: #{cnn_tagger_forward.1} parent=11 // pred_check
          %p206 = pneg %p60
        $region14: #{cnn_tagger_forward.1} parent=11 // pred_check_branch
          %208 = sbr.rel (%p206) target = $region16
        $region15: #{cnn_tagger_forward.1} parent=11 // pred_region
          _
        $region16: #{cnn_tagger_forward.1} parent=11 // pred_fallthru
          _
        // Predicated region
        $region17: #{cnn_tagger_forward.1} parent=11 // pred_check
          %p209 = pneg %p81
        $region18: #{cnn_tagger_forward.1} parent=11 // pred_check_branch
          %211 = sbr.rel (%p209) target = $region20
        $region19: #{cnn_tagger_forward.1} parent=11 // pred_region
          _
        $region20: #{cnn_tagger_forward.1} parent=11 // pred_fallthru
          _
        // Predicated region
        $region21: #{cnn_tagger_forward.1} parent=11 // pred_check
          %p212 = pneg %p102
        $region22: #{cnn_tagger_forward.1} parent=11 // pred_check_branch
          %214 = sbr.rel (%p212) target = $region24
        $region23: #{cnn_tagger_forward.1} parent=11 // pred_region
          _
        $region24: #{cnn_tagger_forward.1} parent=11 // pred_fallthru
          _
        // Predicated region
        $region25: #{cnn_tagger_forward.1} parent=11 // pred_check
          %p215 = pneg %p123
        $region26: #{cnn_tagger_forward.1} parent=11 // pred_check_branch
          %217 = sbr.rel (%p215) target = $region28
        $region27: #{cnn_tagger_forward.1} parent=11 // pred_region
          _
        $region28: #{cnn_tagger_forward.1} parent=11 // pred_fallthru
          _
        // Predicated region
        $region29: #{cnn_tagger_forward.1} parent=11 // pred_check
          %p218 = pneg %p144
        $region30: #{cnn_tagger_forward.1} parent=11 // pred_check_branch
          %220 = sbr.rel (%p218) target = $region32
        $region31: #{cnn_tagger_forward.1} parent=11 // pred_region
          _
        $region32: #{cnn_tagger_forward.1} parent=11 // pred_fallthru
          _
        // Predicated region
        $region33: #{cnn_tagger_forward.1} parent=11 // pred_check
          %p221 = pneg %p165
        $region34: #{cnn_tagger_forward.1} parent=11 // pred_check_branch
          %223 = sbr.rel (%p221) target = $region36
        $region35: #{cnn_tagger_forward.1} parent=11 // pred_region
          _
        $region36: #{cnn_tagger_forward.1} parent=11 // pred_fallthru
          _
      $region12: #{cnn_tagger_forward.1} parent=5 // pred_fallthru
        _
      %p224 = scmp.lt.s32.totalorder %s13, 2
      // Predicated region
      $region37: #{cnn_tagger_forward.1} parent=5 // pred_check
        %p225 = pneg %p224
      $region38: #{cnn_tagger_forward.1} parent=5 // pred_check_branch
        %227 = sbr.rel (%p225) target = $region40
      $region39: #{cnn_tagger_forward.1} parent=5 // pred_region
        // Predicated region
        $region41: #{cnn_tagger_forward.1} parent=39 // pred_check
          %p228 = pneg %p33
        $region42: #{cnn_tagger_forward.1} parent=39 // pred_check_branch
          %230 = sbr.rel (%p228) target = $region44
        $region43: #{cnn_tagger_forward.1} parent=39 // pred_region
          %s231 = sand.u32 %s23, 1
          %s232 = sand.u32 %s23, 1
          %s233 = smul.addr %s232, 288
          %s234 = scalar_lea.vmem [#allocation2], %s233
          %s235 = smul.u32 4, %s13
          %s236 = smul.addr %s235, 8
          %s237 = scalar_lea.vmem %s0, %s236
          // Predicated region
          $region45: #{cnn_tagger_forward.1} parent=43 // pred_check
            _
          $region46: #{cnn_tagger_forward.1} parent=43 // pred_check_branch
            %239 = sbr.rel (0) target = $region48
          $region47: #{cnn_tagger_forward.1} parent=43 // pred_region
            // Predicated region
            $region49: #{cnn_tagger_forward.1} parent=47 // pred_check
              _
            $region50: #{cnn_tagger_forward.1} parent=47 // pred_check_branch
              %241 = sbr.rel (0) target = $region52
            $region51: #{cnn_tagger_forward.1} parent=47 // pred_region
              // Predicated region
              $region64: #{cnn_tagger_forward.1} parent=51 // pred_check
                _
              $region65: #{cnn_tagger_forward.1} parent=51 // pred_check_branch
                %327 = sbr.rel (0) target = $region67
              $region66: #{cnn_tagger_forward.1} parent=51 // pred_region
                loop: start=0, step=1, limit=1
                $region68: #{cnn_tagger_forward.1} parent=66 // loop_pre_header
                  _
                $region69: #{cnn_tagger_forward.1} parent=66 // loop_header
                  %s329 = sphi 0, %s333
                  %p330 = scmp.ge.s32.totalorder %s329, 1
                  %s334 = sphi %s237, %s237
                  %s335 = sphi %s234, %s234
                $region70: #{cnn_tagger_forward.1} parent=66 // loop_header_branch
                  %332 = sbr.rel (%p330) target = $region74
                $region71: #{cnn_tagger_forward.1} parent=66 // loop_body
                  %v336 = vld [vmem:[%s334] sm:$0xff]
                  %337 = vst [vmem:[%s335] sm:$0xff] %v336
                  %v338 = vld [vmem:[%s334 + $0x8] sm:$0xff]
                  %339 = vst [vmem:[%s335 + $0x8] sm:$0xff] %v338
                  %v340 = vld [vmem:[%s334 + $0x10] sm:$0xff]
                  %341 = vst [vmem:[%s335 + $0x10] sm:$0xff] %v340
                  %v342 = vld [vmem:[%s334 + $0x18] sm:$0xff]
                  %343 = vst [vmem:[%s335 + $0x18] sm:$0xff] %v342
                  %v344 = vld [vmem:[%s334 + $0x40] sm:$0xff]
                  %345 = vst [vmem:[%s335 + $0x20] sm:$0xff] %v344
                  %v346 = vld [vmem:[%s334 + $0x48] sm:$0xff]
                  %347 = vst [vmem:[%s335 + $0x28] sm:$0xff] %v346
                  %v348 = vld [vmem:[%s334 + $0x50] sm:$0xff]
                  %349 = vst [vmem:[%s335 + $0x30] sm:$0xff] %v348
                  %v350 = vld [vmem:[%s334 + $0x58] sm:$0xff]
                  %351 = vst [vmem:[%s335 + $0x38] sm:$0xff] %v350
                  %v352 = vld [vmem:[%s334 + $0x80] sm:$0xff]
                  %353 = vst [vmem:[%s335 + $0x40] sm:$0xff] %v352
                  %v354 = vld [vmem:[%s334 + $0x88] sm:$0xff]
                  %355 = vst [vmem:[%s335 + $0x48] sm:$0xff] %v354
                  %v356 = vld [vmem:[%s334 + $0x90] sm:$0xff]
                  %357 = vst [vmem:[%s335 + $0x50] sm:$0xff] %v356
                  %v358 = vld [vmem:[%s334 + $0x98] sm:$0xff]
                  %359 = vst [vmem:[%s335 + $0x58] sm:$0xff] %v358
                  %v360 = vld [vmem:[%s334 + $0xc0] sm:$0xff]
                  %361 = vst [vmem:[%s335 + $0x60] sm:$0xff] %v360
                  %v362 = vld [vmem:[%s334 + $0xc8] sm:$0xff]
                  %363 = vst [vmem:[%s335 + $0x68] sm:$0xff] %v362
                  %v364 = vld [vmem:[%s334 + $0xd0] sm:$0xff]
                  %365 = vst [vmem:[%s335 + $0x70] sm:$0xff] %v364
                  %v366 = vld [vmem:[%s334 + $0xd8] sm:$0xff]
                  %367 = vst [vmem:[%s335 + $0x78] sm:$0xff] %v366
                  %v368 = vld [vmem:[%s334 + $0x100] sm:$0xff]
                  %369 = vst [vmem:[%s335 + $0x80] sm:$0xff] %v368
                  %v370 = vld [vmem:[%s334 + $0x108] sm:$0xff]
                  %371 = vst [vmem:[%s335 + $0x88] sm:$0xff] %v370
                  %v372 = vld [vmem:[%s334 + $0x110] sm:$0xff]
                  %373 = vst [vmem:[%s335 + $0x90] sm:$0xff] %v372
                  %v374 = vld [vmem:[%s334 + $0x118] sm:$0xff]
                  %375 = vst [vmem:[%s335 + $0x98] sm:$0xff] %v374
                  %v376 = vld [vmem:[%s334 + $0x140] sm:$0xff]
                  %377 = vst [vmem:[%s335 + $0xa0] sm:$0xff] %v376
                  %v378 = vld [vmem:[%s334 + $0x148] sm:$0xff]
                  %379 = vst [vmem:[%s335 + $0xa8] sm:$0xff] %v378
                  %v380 = vld [vmem:[%s334 + $0x150] sm:$0xff]
                  %381 = vst [vmem:[%s335 + $0xb0] sm:$0xff] %v380
                  %v382 = vld [vmem:[%s334 + $0x158] sm:$0xff]
                  %383 = vst [vmem:[%s335 + $0xb8] sm:$0xff] %v382
                  %v384 = vld [vmem:[%s334 + $0x180] sm:$0xff]
                  %385 = vst [vmem:[%s335 + $0xc0] sm:$0xff] %v384
                  %v386 = vld [vmem:[%s334 + $0x188] sm:$0xff]
                  %387 = vst [vmem:[%s335 + $0xc8] sm:$0xff] %v386
                  %v388 = vld [vmem:[%s334 + $0x190] sm:$0xff]
                  %389 = vst [vmem:[%s335 + $0xd0] sm:$0xff] %v388
                  %v390 = vld [vmem:[%s334 + $0x198] sm:$0xff]
                  %391 = vst [vmem:[%s335 + $0xd8] sm:$0xff] %v390
                  %v392 = vld [vmem:[%s334 + $0x1c0] sm:$0xff]
                  %393 = vst [vmem:[%s335 + $0xe0] sm:$0xff] %v392
                  %v394 = vld [vmem:[%s334 + $0x1c8] sm:$0xff]
                  %395 = vst [vmem:[%s335 + $0xe8] sm:$0xff] %v394
                  %v396 = vld [vmem:[%s334 + $0x1d0] sm:$0xff]
                  %397 = vst [vmem:[%s335 + $0xf0] sm:$0xff] %v396
                  %v398 = vld [vmem:[%s334 + $0x1d8] sm:$0xff]
                  %399 = vst [vmem:[%s335 + $0xf8] sm:$0xff] %v398
                  %v400 = vld [vmem:[%s334 + $0x200] sm:$0xff]
                  %401 = vst [vmem:[%s335 + $0x100] sm:$0xff] %v400
                  %v402 = vld [vmem:[%s334 + $0x208] sm:$0xff]
                  %403 = vst [vmem:[%s335 + $0x108] sm:$0xff] %v402
                  %v404 = vld [vmem:[%s334 + $0x210] sm:$0xff]
                  %405 = vst [vmem:[%s335 + $0x110] sm:$0xff] %v404
                  %v406 = vld [vmem:[%s334 + $0x218] sm:$0xff]
                  %407 = vst [vmem:[%s335 + $0x118] sm:$0xff] %v406
                $region72: #{cnn_tagger_forward.1} parent=66 // loop_footer
                  %s333 = sadd.s32 1, %s329
                $region73: #{cnn_tagger_forward.1} parent=66 // loop_footer_branch
                  %328 = sbr.rel target = $region69
                $region74: #{cnn_tagger_forward.1} parent=66 // loop_exit
                  _
              $region67: #{cnn_tagger_forward.1} parent=51 // pred_fallthru
                _
              // Predicated region
              $region75: #{cnn_tagger_forward.1} parent=51 // pred_check
                _
              $region76: #{cnn_tagger_forward.1} parent=51 // pred_check_branch
                %409 = sbr.rel target = $region78
              $region77: #{cnn_tagger_forward.1} parent=51 // pred_region
                _
              $region78: #{cnn_tagger_forward.1} parent=51 // pred_fallthru
                _
            $region52: #{cnn_tagger_forward.1} parent=47 // pred_fallthru
              _
            // Predicated region
            $region53: #{cnn_tagger_forward.1} parent=47 // pred_check
              _
            $region54: #{cnn_tagger_forward.1} parent=47 // pred_check_branch
              %243 = sbr.rel target = $region56
            $region55: #{cnn_tagger_forward.1} parent=47 // pred_region
              %s245 = ssub.s32 256, 1
              loop: start=0, step=1, limit=1
              $region57: #{cnn_tagger_forward.1} parent=55 // loop_pre_header
                _
              $region58: #{cnn_tagger_forward.1} parent=55 // loop_header
                %s247 = sphi 0, %s251
                %p248 = scmp.ge.s32.totalorder %s247, 1
                %s252 = sphi %s237, %s237
                %s253 = sphi %s234, %s234
              $region59: #{cnn_tagger_forward.1} parent=55 // loop_header_branch
                %250 = sbr.rel (%p248) target = $region63
              $region60: #{cnn_tagger_forward.1} parent=55 // loop_body
                %v254 = vld [vmem:[%s252] sm:%s245]
                %255 = vst [vmem:[%s253] sm:%s245] %v254
                %v256 = vld [vmem:[%s252 + $0x8] sm:%s245]
                %257 = vst [vmem:[%s253 + $0x8] sm:%s245] %v256
                %v258 = vld [vmem:[%s252 + $0x10] sm:%s245]
                %259 = vst [vmem:[%s253 + $0x10] sm:%s245] %v258
                %v260 = vld [vmem:[%s252 + $0x18] sm:%s245]
                %261 = vst [vmem:[%s253 + $0x18] sm:%s245] %v260
                %v262 = vld [vmem:[%s252 + $0x40] sm:%s245]
                %263 = vst [vmem:[%s253 + $0x20] sm:%s245] %v262
                %v264 = vld [vmem:[%s252 + $0x48] sm:%s245]
                %265 = vst [vmem:[%s253 + $0x28] sm:%s245] %v264
                %v266 = vld [vmem:[%s252 + $0x50] sm:%s245]
                %267 = vst [vmem:[%s253 + $0x30] sm:%s245] %v266
                %v268 = vld [vmem:[%s252 + $0x58] sm:%s245]
                %269 = vst [vmem:[%s253 + $0x38] sm:%s245] %v268
                %v270 = vld [vmem:[%s252 + $0x80] sm:%s245]
                %271 = vst [vmem:[%s253 + $0x40] sm:%s245] %v270
                %v272 = vld [vmem:[%s252 + $0x88] sm:%s245]
                %273 = vst [vmem:[%s253 + $0x48] sm:%s245] %v272
                %v274 = vld [vmem:[%s252 + $0x90] sm:%s245]
                %275 = vst [vmem:[%s253 + $0x50] sm:%s245] %v274
                %v276 = vld [vmem:[%s252 + $0x98] sm:%s245]
                %277 = vst [vmem:[%s253 + $0x58] sm:%s245] %v276
                %v278 = vld [vmem:[%s252 + $0xc0] sm:%s245]
                %279 = vst [vmem:[%s253 + $0x60] sm:%s245] %v278
                %v280 = vld [vmem:[%s252 + $0xc8] sm:%s245]
                %281 = vst [vmem:[%s253 + $0x68] sm:%s245] %v280
                %v282 = vld [vmem:[%s252 + $0xd0] sm:%s245]
                %283 = vst [vmem:[%s253 + $0x70] sm:%s245] %v282
                %v284 = vld [vmem:[%s252 + $0xd8] sm:%s245]
                %285 = vst [vmem:[%s253 + $0x78] sm:%s245] %v284
                %v286 = vld [vmem:[%s252 + $0x100] sm:%s245]
                %287 = vst [vmem:[%s253 + $0x80] sm:%s245] %v286
                %v288 = vld [vmem:[%s252 + $0x108] sm:%s245]
                %289 = vst [vmem:[%s253 + $0x88] sm:%s245] %v288
                %v290 = vld [vmem:[%s252 + $0x110] sm:%s245]
                %291 = vst [vmem:[%s253 + $0x90] sm:%s245] %v290
                %v292 = vld [vmem:[%s252 + $0x118] sm:%s245]
                %293 = vst [vmem:[%s253 + $0x98] sm:%s245] %v292
                %v294 = vld [vmem:[%s252 + $0x140] sm:%s245]
                %295 = vst [vmem:[%s253 + $0xa0] sm:%s245] %v294
                %v296 = vld [vmem:[%s252 + $0x148] sm:%s245]
                %297 = vst [vmem:[%s253 + $0xa8] sm:%s245] %v296
                %v298 = vld [vmem:[%s252 + $0x150] sm:%s245]
                %299 = vst [vmem:[%s253 + $0xb0] sm:%s245] %v298
                %v300 = vld [vmem:[%s252 + $0x158] sm:%s245]
                %301 = vst [vmem:[%s253 + $0xb8] sm:%s245] %v300
                %v302 = vld [vmem:[%s252 + $0x180] sm:%s245]
                %303 = vst [vmem:[%s253 + $0xc0] sm:%s245] %v302
                %v304 = vld [vmem:[%s252 + $0x188] sm:%s245]
                %305 = vst [vmem:[%s253 + $0xc8] sm:%s245] %v304
                %v306 = vld [vmem:[%s252 + $0x190] sm:%s245]
                %307 = vst [vmem:[%s253 + $0xd0] sm:%s245] %v306
                %v308 = vld [vmem:[%s252 + $0x198] sm:%s245]
                %309 = vst [vmem:[%s253 + $0xd8] sm:%s245] %v308
                %v310 = vld [vmem:[%s252 + $0x1c0] sm:%s245]
                %311 = vst [vmem:[%s253 + $0xe0] sm:%s245] %v310
                %v312 = vld [vmem:[%s252 + $0x1c8] sm:%s245]
                %313 = vst [vmem:[%s253 + $0xe8] sm:%s245] %v312
                %v314 = vld [vmem:[%s252 + $0x1d0] sm:%s245]
                %315 = vst [vmem:[%s253 + $0xf0] sm:%s245] %v314
                %v316 = vld [vmem:[%s252 + $0x1d8] sm:%s245]
                %317 = vst [vmem:[%s253 + $0xf8] sm:%s245] %v316
                %v318 = vld [vmem:[%s252 + $0x200] sm:%s245]
                %319 = vst [vmem:[%s253 + $0x100] sm:%s245] %v318
                %v320 = vld [vmem:[%s252 + $0x208] sm:%s245]
                %321 = vst [vmem:[%s253 + $0x108] sm:%s245] %v320
                %v322 = vld [vmem:[%s252 + $0x210] sm:%s245]
                %323 = vst [vmem:[%s253 + $0x110] sm:%s245] %v322
                %v324 = vld [vmem:[%s252 + $0x218] sm:%s245]
                %325 = vst [vmem:[%s253 + $0x118] sm:%s245] %v324
              $region61: #{cnn_tagger_forward.1} parent=55 // loop_footer
                %s251 = sadd.s32 1, %s247
              $region62: #{cnn_tagger_forward.1} parent=55 // loop_footer_branch
                %246 = sbr.rel target = $region58
              $region63: #{cnn_tagger_forward.1} parent=55 // loop_exit
                _
            $region56: #{cnn_tagger_forward.1} parent=47 // pred_fallthru
              _
          $region48: #{cnn_tagger_forward.1} parent=43 // pred_fallthru
            _
          %410 = vnop
        $region44: #{cnn_tagger_forward.1} parent=39 // pred_fallthru
          _
      $region40: #{cnn_tagger_forward.1} parent=5 // pred_fallthru
        _
      %p411 = scmp.le.s32.totalorder 1, %s13
      %p412 = scmp.lt.s32.totalorder %s13, 3
      %p413 = pnand %p411, %p412
      %p414 = pneg %p413
      // Predicated region
      $region79: #{cnn_tagger_forward.1} parent=5 // pred_check
        _
      $region80: #{cnn_tagger_forward.1} parent=5 // pred_check_branch
        %416 = sbr.rel (%p413) target = $region82
      $region81: #{cnn_tagger_forward.1} parent=5 // pred_region
        %s417 = ssub.s32 %s13, 1
        %s418 = sand.u32 %s26, 1
        %s419 = sand.u32 %s26, 1
        %s420 = smul.addr %s419, 288
        %s421 = scalar_lea.vmem [#allocation2], %s420
        // Predicated region
        $region83: #{cnn_tagger_forward.1} parent=81 // pred_check
          %p422 = pneg %p39
        $region84: #{cnn_tagger_forward.1} parent=81 // pred_check_branch
          %424 = sbr.rel (%p422) target = $region86
        $region85: #{cnn_tagger_forward.1} parent=81 // pred_region
          _
        $region86: #{cnn_tagger_forward.1} parent=81 // pred_fallthru
          _
        %s425 = sand.u32 %s26, 1
        %s426 = sand.u32 %s26, 1
        %s427 = smul.addr %s426, 288
        %s428 = scalar_lea.vmem [#allocation2], %s427
        %p429 = pneg %p39
        %p430 = pneg %p36
        %p431 = pneg %p60
        %p432 = pneg %p57
        %p433 = pneg %p81
        %p434 = pneg %p78
        %p435 = pneg %p102
        %p436 = pneg %p99
        %p437 = pneg %p123
        %p438 = pneg %p120
        %p439 = pneg %p144
        %p440 = pneg %p141
        %p441 = pneg %p165
        %p442 = pneg %p162
        %p443 = pneg %p191
        %p444 = pneg %p188
        %s445 = smul.u32 4, %s18
        %p446 = scmp.lt.s32.totalorder %s445, 7
        %s447 = scalar_select %p446, %s445, 7
        %s448 = smul.addr %s447, 8
        %s449 = scalar_lea.vmem %s7, %s448
        %s450 = smul.u32 4, %s18
        %s451 = smul.u32 4, %s18
        %p452 = scmp.lt.s32.totalorder %s451, 7
        %s453 = scalar_select %p452, %s451, 7
        %s454 = smul.addr %s453, 8
        %s455 = scalar_lea.vmem %s7, %s454
        %s456 = smul.u32 4, %s18
        %v458 = vld [vmem:[%s421] sm:$0xff]
        %v459 = vld [vmem:[%s421 + $0x8] sm:$0xff]
        %v460 = vld [vmem:[%s421 + $0x10] sm:$0xff]
        %v461 = vld [vmem:[%s421 + $0x18] sm:$0xff]
        %v462 = vld [vmem:[%s421 + $0x20] sm:$0xff]
        %v463 = vld [vmem:[%s421 + $0x28] sm:$0xff]
        %v464 = vld [vmem:[%s421 + $0x30] sm:$0xff]
        %v465 = vld [vmem:[%s421 + $0x38] sm:$0xff]
        %v466 = vld [vmem:[%s421 + $0x40] sm:$0xff]
        %v467 = vld [vmem:[%s421 + $0x48] sm:$0xff]
        %v468 = vld [vmem:[%s421 + $0x50] sm:$0xff]
        %v469 = vld [vmem:[%s421 + $0x58] sm:$0xff]
        %v470 = vld [vmem:[%s421 + $0x60] sm:$0xff]
        %v471 = vld [vmem:[%s421 + $0x68] sm:$0xff]
        %v472 = vld [vmem:[%s421 + $0x70] sm:$0xff]
        %v473 = vld [vmem:[%s421 + $0x78] sm:$0xff]
        %v474 = vld [vmem:[%s421 + $0x80] sm:$0xff]
        %v475 = vld [vmem:[%s421 + $0x88] sm:$0xff]
        %v476 = vld [vmem:[%s421 + $0x90] sm:$0xff]
        %v477 = vld [vmem:[%s421 + $0x98] sm:$0xff]
        %v478 = vld [vmem:[%s421 + $0xa0] sm:$0xff]
        %v479 = vld [vmem:[%s421 + $0xa8] sm:$0xff]
        %v480 = vld [vmem:[%s421 + $0xb0] sm:$0xff]
        %v481 = vld [vmem:[%s421 + $0xb8] sm:$0xff]
        %v482 = vld [vmem:[%s421 + $0xc0] sm:$0xff]
        %v483 = vld [vmem:[%s421 + $0xc8] sm:$0xff]
        %v484 = vld [vmem:[%s421 + $0xd0] sm:$0xff]
        %v485 = vld [vmem:[%s421 + $0xd8] sm:$0xff]
        %v486 = vld [vmem:[%s421 + $0xe0] sm:$0xff]
        %v487 = vld [vmem:[%s421 + $0xe8] sm:$0xff]
        %v488 = vld [vmem:[%s421 + $0xf0] sm:$0xff]
        %v489 = vld [vmem:[%s421 + $0xf8] sm:$0xff]
        %v490 = vld [vmem:[%s421 + $0x100] sm:$0xff]
        %v491 = vld [vmem:[%s421 + $0x108] sm:$0xff]
        %v492 = vld [vmem:[%s421 + $0x110] sm:$0xff]
        %v493 = vld [vmem:[%s421 + $0x118] sm:$0xff]
        %v494 = vpack.c.bf16 %v459, %v458
        %v495 = vpack.c.bf16 %v461, %v460
        %v496 = vpack.c.bf16 %v463, %v462
        %v497 = vpack.c.bf16 %v465, %v464
        %v498 = vpack.c.bf16 %v467, %v466
        %v499 = vpack.c.bf16 %v469, %v468
        %v500 = vpack.c.bf16 %v471, %v470
        %v501 = vpack.c.bf16 %v473, %v472
        %v502 = vpack.c.bf16 %v475, %v474
        %v503 = vpack.c.bf16 %v477, %v476
        %v504 = vpack.c.bf16 %v479, %v478
        %v505 = vpack.c.bf16 %v481, %v480
        %v506 = vpack.c.bf16 %v483, %v482
        %v507 = vpack.c.bf16 %v485, %v484
        %v508 = vpack.c.bf16 %v487, %v486
        %v509 = vpack.c.bf16 %v489, %v488
        %v510 = vpack.c.bf16 %v491, %v490
        %v511 = vpack.c.bf16 %v493, %v492
        %v512 = vld [vmem:[%s1] sm:$0xf]
        %v513 = vld [vmem:[%s1 + $0x4] sm:$0xf]
        %v514 = vld [vmem:[%s1 + $0x8] sm:$0xf]
        %v515 = vld [vmem:[%s2] sm:$0x1]
        %v517 = vlaneseq
        %v518 = vshrl.u32 %v517, 7
        %v519 = vsub.s32 0, %v518
        %v520 = vrot.slane %v515, %v519
        %v525 = vunpack.c.l.b16 %v512
        %v526 = vunpack.c.l.b16 %v513
        %v527 = vunpack.c.l.b16 %v514
        %v528 = vpack.c.b16 %v526, %v525
        %v529 = vpack.c.b16 %v527, %v527
        %vm531 = vcmask 195584
        %v533 = vsel %vm531, %v494, 0
        %v536 = vsel %vm531, %v495, 0
        %v539 = vsel %vm531, %v496, 0
        %v542 = vsel %vm531, %v497, 0
        %v545 = vsel %vm531, %v498, 0
        %v548 = vsel %vm531, %v499, 0
        %v551 = vsel %vm531, %v500, 0
        %v554 = vsel %vm531, %v501, 0
        %v557 = vsel %vm531, %v502, 0
        %v560 = vsel %vm531, %v503, 0
        %v563 = vsel %vm531, %v504, 0
        %v566 = vsel %vm531, %v505, 0
        %v569 = vsel %vm531, %v506, 0
        %v572 = vsel %vm531, %v507, 0
        %v575 = vsel %vm531, %v508, 0
        %v578 = vsel %vm531, %v509, 0
        %v581 = vsel %vm531, %v510, 0
        %v584 = vsel %vm531, %v511, 0
        %vm586 = vcmask 1043456
        %v588 = vsel %vm586, %v529, 0
        %590 = vmatprep.subr.bf16.mxu0 0
        %591 = vmatpush1.bf16.msra.mxu0 0
        %592 = vmatprep.subr.bf16.mxu0 0
        %593 = vmatpush1.bf16.msra.mxu0 0
        %594 = vmatprep.subr.bf16.mxu0 0
        %595 = vmatpush1.bf16.msra.mxu0 0
        %596 = vmatprep.subr.bf16.mxu0 0
        %597 = vmatpush1.bf16.msra.mxu0 0
        %598 = vmatprep.subr.bf16.mxu0 0
        %599 = vmatpush1.bf16.msra.mxu0 0
        %600 = vmatprep.subr.bf16.mxu0 0
        %601 = vmatpush1.bf16.msra.mxu0 0
        %602 = vmatprep.subr.bf16.mxu0 0
        %603 = vmatpush1.bf16.msra.mxu0 %v588
        %604 = vmatprep.subr.bf16.mxu0 0
        %605 = vmatpush1.bf16.msra.mxu0 %v528
        %606 = vmatprep.subr.bf16.mxu0 0
        %607 = vmatpush2.bf16.msra.mxu0 0
        %608 = vmatprep.subr.bf16.mxu0 0
        %609 = vmatpush2.bf16.msra.mxu0 0
        %610 = vmatprep.subr.bf16.mxu0 0
        %611 = vmatpush2.bf16.msra.mxu0 0
        %612 = vmatprep.subr.bf16.mxu0 0
        %613 = vmatpush2.bf16.msra.mxu0 0
        %614 = vmatprep.subr.bf16.mxu0 0
        %615 = vmatpush2.bf16.msra.mxu0 0
        %616 = vmatprep.subr.bf16.mxu0 0
        %617 = vmatpush2.bf16.msra.mxu0 0
        %618 = vmatprep.subr.bf16.mxu0 0
        %619 = vmatpush2.bf16.msra.mxu0 0
        %620 = vmatprep.subr.bf16.mxu0 0
        %621 = vmatpush2.bf16.msra.mxu0 0
        %622 = vmatprep.mubr.bf16.mxu0 0
        %623 = vmatmul.mubr.bf16.gmra.mxu0 %v533
        %v624 = vpop.f32.mrf.mxu0
        %v625 = vadd.f32 %v520, %v624
        %v626 = vpop.f32.mrf.mxu0
        %v627 = vpop.f32.mrf.mxu0
        %v628 = vadd.f32 %v520, %v627
        %v629 = vpop.f32.mrf.mxu0
        %630 = vmatprep.mubr.bf16.mxu0 0
        %631 = vmatmul.mubr.bf16.gmra.mxu0 %v536
        %v632 = vpop.f32.mrf.mxu0
        %v633 = vadd.f32 %v520, %v632
        %v634 = vpop.f32.mrf.mxu0
        %v635 = vpop.f32.mrf.mxu0
        %v636 = vadd.f32 %v520, %v635
        %v637 = vpop.f32.mrf.mxu0
        %638 = vmatprep.mubr.bf16.mxu0 0
        %639 = vmatmul.mubr.bf16.gmra.mxu0 %v539
        %v640 = vpop.f32.mrf.mxu0
        %v641 = vadd.f32 %v520, %v640
        %v642 = vpop.f32.mrf.mxu0
        %v643 = vpop.f32.mrf.mxu0
        %v644 = vadd.f32 %v520, %v643
        %v645 = vpop.f32.mrf.mxu0
        %646 = vmatprep.mubr.bf16.mxu0 0
        %647 = vmatmul.mubr.bf16.gmra.mxu0 %v542
        %v648 = vpop.f32.mrf.mxu0
        %v649 = vadd.f32 %v520, %v648
        %v650 = vpop.f32.mrf.mxu0
        %v651 = vpop.f32.mrf.mxu0
        %v652 = vadd.f32 %v520, %v651
        %v653 = vpop.f32.mrf.mxu0
        %654 = vmatprep.mubr.bf16.mxu0 0
        %655 = vmatmul.mubr.bf16.gmra.mxu0 %v545
        %v656 = vpop.f32.mrf.mxu0
        %v657 = vadd.f32 %v520, %v656
        %v658 = vpop.f32.mrf.mxu0
        %v659 = vpop.f32.mrf.mxu0
        %v660 = vadd.f32 %v520, %v659
        %v661 = vpop.f32.mrf.mxu0
        %662 = vmatprep.mubr.bf16.mxu0 0
        %663 = vmatmul.mubr.bf16.gmra.mxu0 %v548
        %v664 = vpop.f32.mrf.mxu0
        %v665 = vadd.f32 %v520, %v664
        %v666 = vpop.f32.mrf.mxu0
        %v667 = vpop.f32.mrf.mxu0
        %v668 = vadd.f32 %v520, %v667
        %v669 = vpop.f32.mrf.mxu0
        %670 = vmatprep.mubr.bf16.mxu0 0
        %671 = vmatmul.mubr.bf16.gmra.mxu0 %v551
        %v672 = vpop.f32.mrf.mxu0
        %v673 = vadd.f32 %v520, %v672
        %v674 = vpop.f32.mrf.mxu0
        %v675 = vpop.f32.mrf.mxu0
        %v676 = vadd.f32 %v520, %v675
        %v677 = vpop.f32.mrf.mxu0
        %678 = vmatprep.mubr.bf16.mxu0 0
        %679 = vmatmul.mubr.bf16.gmra.mxu0 %v554
        %v680 = vpop.f32.mrf.mxu0
        %v681 = vadd.f32 %v520, %v680
        %v682 = vpop.f32.mrf.mxu0
        %v683 = vpop.f32.mrf.mxu0
        %v684 = vadd.f32 %v520, %v683
        %v685 = vpop.f32.mrf.mxu0
        %686 = vmatprep.mubr.bf16.mxu0 0
        %687 = vmatmul.mubr.bf16.gmra.mxu0 %v557
        %v688 = vpop.f32.mrf.mxu0
        %v689 = vadd.f32 %v520, %v688
        %v690 = vpop.f32.mrf.mxu0
        %v691 = vpop.f32.mrf.mxu0
        %v692 = vadd.f32 %v520, %v691
        %v693 = vpop.f32.mrf.mxu0
        %694 = vmatprep.mubr.bf16.mxu0 0
        %695 = vmatmul.mubr.bf16.gmra.mxu0 %v560
        %v696 = vpop.f32.mrf.mxu0
        %v697 = vadd.f32 %v520, %v696
        %v698 = vpop.f32.mrf.mxu0
        %v699 = vpop.f32.mrf.mxu0
        %v700 = vadd.f32 %v520, %v699
        %v701 = vpop.f32.mrf.mxu0
        %702 = vmatprep.mubr.bf16.mxu0 0
        %703 = vmatmul.mubr.bf16.gmra.mxu0 %v563
        %v704 = vpop.f32.mrf.mxu0
        %v705 = vadd.f32 %v520, %v704
        %v706 = vpop.f32.mrf.mxu0
        %v707 = vpop.f32.mrf.mxu0
        %v708 = vadd.f32 %v520, %v707
        %v709 = vpop.f32.mrf.mxu0
        %710 = vmatprep.mubr.bf16.mxu0 0
        %711 = vmatmul.mubr.bf16.gmra.mxu0 %v566
        %v712 = vpop.f32.mrf.mxu0
        %v713 = vadd.f32 %v520, %v712
        %v714 = vpop.f32.mrf.mxu0
        %v715 = vpop.f32.mrf.mxu0
        %v716 = vadd.f32 %v520, %v715
        %v717 = vpop.f32.mrf.mxu0
        %718 = vmatprep.mubr.bf16.mxu0 0
        %719 = vmatmul.mubr.bf16.gmra.mxu0 %v569
        %v720 = vpop.f32.mrf.mxu0
        %v721 = vadd.f32 %v520, %v720
        %v722 = vpop.f32.mrf.mxu0
        %v723 = vpop.f32.mrf.mxu0
        %v724 = vadd.f32 %v520, %v723
        %v725 = vpop.f32.mrf.mxu0
        %726 = vmatprep.mubr.bf16.mxu0 0
        %727 = vmatmul.mubr.bf16.gmra.mxu0 %v572
        %v728 = vpop.f32.mrf.mxu0
        %v729 = vadd.f32 %v520, %v728
        %v730 = vpop.f32.mrf.mxu0
        %v731 = vpop.f32.mrf.mxu0
        %v732 = vadd.f32 %v520, %v731
        %v733 = vpop.f32.mrf.mxu0
        %734 = vmatprep.mubr.bf16.mxu0 0
        %735 = vmatmul.mubr.bf16.gmra.mxu0 %v575
        %v736 = vpop.f32.mrf.mxu0
        %v737 = vadd.f32 %v520, %v736
        %v738 = vpop.f32.mrf.mxu0
        %v739 = vpop.f32.mrf.mxu0
        %v740 = vadd.f32 %v520, %v739
        %v741 = vpop.f32.mrf.mxu0
        %742 = vmatprep.mubr.bf16.mxu0 0
        %743 = vmatmul.mubr.bf16.gmra.mxu0 %v578
        %v744 = vpop.f32.mrf.mxu0
        %v745 = vadd.f32 %v520, %v744
        %v746 = vpop.f32.mrf.mxu0
        %v747 = vpop.f32.mrf.mxu0
        %v748 = vadd.f32 %v520, %v747
        %v749 = vpop.f32.mrf.mxu0
        %750 = vmatprep.mubr.bf16.mxu0 0
        %751 = vmatmul.mubr.bf16.gmra.mxu0 %v581
        %v752 = vpop.f32.mrf.mxu0
        %v753 = vadd.f32 %v520, %v752
        %v754 = vpop.f32.mrf.mxu0
        %v755 = vpop.f32.mrf.mxu0
        %v756 = vadd.f32 %v520, %v755
        %v757 = vpop.f32.mrf.mxu0
        %758 = vmatprep.mubr.bf16.mxu0 0
        %759 = vmatmul.mubr.bf16.gmra.mxu0 %v584
        %v760 = vpop.f32.mrf.mxu0
        %v761 = vadd.f32 %v520, %v760
        %v762 = vpop.f32.mrf.mxu0
        %v763 = vpop.f32.mrf.mxu0
        %v764 = vadd.f32 %v520, %v763
        %v765 = vpop.f32.mrf.mxu0
        %766 = vdwg.mxu0
        %v767 = vmax.f32 %v625, 0.0
        %v768 = vmax.f32 %v628, 0.0
        %v769 = vmax.f32 %v633, 0.0
        %v770 = vmax.f32 %v636, 0.0
        %v771 = vmax.f32 %v641, 0.0
        %v772 = vmax.f32 %v644, 0.0
        %v773 = vmax.f32 %v649, 0.0
        %v774 = vmax.f32 %v652, 0.0
        %v775 = vmax.f32 %v657, 0.0
        %v776 = vmax.f32 %v660, 0.0
        %v777 = vmax.f32 %v665, 0.0
        %v778 = vmax.f32 %v668, 0.0
        %v779 = vmax.f32 %v673, 0.0
        %v780 = vmax.f32 %v676, 0.0
        %v781 = vmax.f32 %v681, 0.0
        %v782 = vmax.f32 %v684, 0.0
        %v783 = vmax.f32 %v689, 0.0
        %v784 = vmax.f32 %v692, 0.0
        %v785 = vmax.f32 %v697, 0.0
        %v786 = vmax.f32 %v700, 0.0
        %v787 = vmax.f32 %v705, 0.0
        %v788 = vmax.f32 %v708, 0.0
        %v789 = vmax.f32 %v713, 0.0
        %v790 = vmax.f32 %v716, 0.0
        %v791 = vmax.f32 %v721, 0.0
        %v792 = vmax.f32 %v724, 0.0
        %v793 = vmax.f32 %v729, 0.0
        %v794 = vmax.f32 %v732, 0.0
        %v795 = vmax.f32 %v737, 0.0
        %v796 = vmax.f32 %v740, 0.0
        %v797 = vmax.f32 %v745, 0.0
        %v798 = vmax.f32 %v748, 0.0
        %v799 = vmax.f32 %v753, 0.0
        %v800 = vmax.f32 %v756, 0.0
        %v801 = vmax.f32 %v761, 0.0
        %v802 = vmax.f32 %v764, 0.0
        %v803 = vmax.f32 %v767, %v771
        %v804 = vmax.f32 %v768, %v772
        %v805 = vmax.f32 %v769, %v773
        %v806 = vmax.f32 %v770, %v774
        %v807 = vmax.f32 %v803, %v775
        %v808 = vmax.f32 %v804, %v776
        %v809 = vmax.f32 %v805, %v777
        %v810 = vmax.f32 %v806, %v778
        %v811 = vmax.f32 %v779, %v783
        %v812 = vmax.f32 %v780, %v784
        %v813 = vmax.f32 %v781, %v785
        %v814 = vmax.f32 %v782, %v786
        %v815 = vmax.f32 %v811, %v787
        %v816 = vmax.f32 %v812, %v788
        %v817 = vmax.f32 %v813, %v789
        %v818 = vmax.f32 %v814, %v790
        %v819 = vmax.f32 %v791, %v795
        %v820 = vmax.f32 %v792, %v796
        %v821 = vmax.f32 %v793, %v797
        %v822 = vmax.f32 %v794, %v798
        %v823 = vmax.f32 %v819, %v799
        %v824 = vmax.f32 %v820, %v800
        %v825 = vmax.f32 %v821, %v801
        %v826 = vmax.f32 %v822, %v802
        %831 = vrot.lane.b32.xlu0 %v807, 32
        %v832 = vpop.permute.xlu0 %831
        %833 = vrot.lane.b32.xlu0 %v808, 32
        %v834 = vpop.permute.xlu0 %833
        %835 = vrot.lane.b32.xlu0 %v809, 32
        %v836 = vpop.permute.xlu0 %835
        %837 = vrot.lane.b32.xlu0 %v810, 32
        %v838 = vpop.permute.xlu0 %837
        %847 = vrot.lane.b32.xlu0 %v815, 64
        %v848 = vpop.permute.xlu0 %847
        %849 = vrot.lane.b32.xlu0 %v816, 64
        %v850 = vpop.permute.xlu0 %849
        %851 = vrot.lane.b32.xlu0 %v817, 64
        %v852 = vpop.permute.xlu0 %851
        %853 = vrot.lane.b32.xlu0 %v818, 64
        %v854 = vpop.permute.xlu0 %853
        %vm859 = vcmask 261120
        %v860 = vsel %vm859, 0.0, %v832
        %v861 = vsel %vm859, 0.0, %v834
        %v862 = vsel %vm859, 0.0, %v836
        %v863 = vsel %vm859, 0.0, %v838
        %vm864 = vcmask 523264
        %v865 = vsel %vm864, %v860, %v848
        %v866 = vsel %vm864, %v861, %v850
        %v867 = vsel %vm864, %v862, %v852
        %v868 = vsel %vm864, %v863, %v854
        %v869 = vpack.c.bf16 %v866, %v865
        %v870 = vpack.c.bf16 %v868, %v867
        %v871 = vld [vmem:[%s3] sm:$0xf]
        %v872 = vld [vmem:[%s3 + $0x4] sm:$0xf]
        %v873 = vld [vmem:[%s3 + $0x8] sm:$0xf]
        %v874 = vld [vmem:[%s3 + $0xc] sm:$0xf]
        %v875 = vld [vmem:[%s3 + $0x10] sm:$0xf]
        %v876 = vld [vmem:[%s3 + $0x14] sm:$0xf]
        %v877 = vld [vmem:[%s3 + $0x18] sm:$0xf]
        %v878 = vld [vmem:[%s3 + $0x1c] sm:$0xf]
        %v879 = vld [vmem:[%s3 + $0x20] sm:$0xf]
        %v880 = vld [vmem:[%s3 + $0x24] sm:$0xf]
        %v881 = vld [vmem:[%s3 + $0x28] sm:$0xf]
        %v882 = vld [vmem:[%s3 + $0x2c] sm:$0xf]
        %v883 = vld [vmem:[%s4] sm:$0x1]
        %v885 = vlaneseq
        %v886 = vshrl.u32 %v885, 7
        %v887 = vsub.s32 0, %v886
        %v888 = vrot.slane %v883, %v887
        %v902 = vunpack.c.l.b16 %v871
        %v903 = vunpack.c.l.b16 %v872
        %v904 = vunpack.c.l.b16 %v873
        %v905 = vunpack.c.l.b16 %v874
        %v906 = vunpack.c.l.b16 %v875
        %v907 = vunpack.c.l.b16 %v876
        %v908 = vunpack.c.l.b16 %v877
        %v909 = vunpack.c.l.b16 %v878
        %v910 = vunpack.c.l.b16 %v879
        %v911 = vunpack.c.l.b16 %v880
        %v912 = vunpack.c.l.b16 %v881
        %v913 = vunpack.c.l.b16 %v882
        %v914 = vpack.c.b16 %v903, %v902
        %v915 = vpack.c.b16 %v905, %v904
        %v916 = vpack.c.b16 %v907, %v906
        %v917 = vpack.c.b16 %v909, %v908
        %v918 = vpack.c.b16 %v911, %v910
        %v919 = vpack.c.b16 %v913, %v912
        %vm926 = vcmask 785408
        %v928 = vsel %vm926, %v869, 0
        %v931 = vsel %vm926, %v870, 0
        %933 = vmatprep.subr.bf16.mxu0 0
        %934 = vmatpush1.bf16.msra.mxu0 0
        %935 = vmatprep.subr.bf16.mxu0 0
        %936 = vmatpush1.bf16.msra.mxu0 0
        %937 = vmatprep.subr.bf16.mxu0 0
        %938 = vmatpush1.bf16.msra.mxu0 %v919
        %939 = vmatprep.subr.bf16.mxu0 0
        %940 = vmatpush1.bf16.msra.mxu0 %v918
        %941 = vmatprep.subr.bf16.mxu0 0
        %942 = vmatpush1.bf16.msra.mxu0 %v917
        %943 = vmatprep.subr.bf16.mxu0 0
        %944 = vmatpush1.bf16.msra.mxu0 %v916
        %945 = vmatprep.subr.bf16.mxu0 0
        %946 = vmatpush1.bf16.msra.mxu0 %v915
        %947 = vmatprep.subr.bf16.mxu0 0
        %948 = vmatpush1.bf16.msra.mxu0 %v914
        %949 = vmatprep.subr.bf16.mxu0 0
        %950 = vmatpush2.bf16.msra.mxu0 0
        %951 = vmatprep.subr.bf16.mxu0 0
        %952 = vmatpush2.bf16.msra.mxu0 0
        %953 = vmatprep.subr.bf16.mxu0 0
        %954 = vmatpush2.bf16.msra.mxu0 0
        %955 = vmatprep.subr.bf16.mxu0 0
        %956 = vmatpush2.bf16.msra.mxu0 0
        %957 = vmatprep.subr.bf16.mxu0 0
        %958 = vmatpush2.bf16.msra.mxu0 0
        %959 = vmatprep.subr.bf16.mxu0 0
        %960 = vmatpush2.bf16.msra.mxu0 0
        %961 = vmatprep.subr.bf16.mxu0 0
        %962 = vmatpush2.bf16.msra.mxu0 0
        %963 = vmatprep.subr.bf16.mxu0 0
        %964 = vmatpush2.bf16.msra.mxu0 0
        %965 = vmatprep.mubr.bf16.mxu0 0
        %966 = vmatmul.mubr.bf16.gmra.mxu0 %v928
        %v967 = vpop.f32.mrf.mxu0
        %v968 = vadd.f32 %v888, %v967
        %v969 = vpop.f32.mrf.mxu0
        %v970 = vpop.f32.mrf.mxu0
        %v971 = vadd.f32 %v888, %v970
        %v972 = vpop.f32.mrf.mxu0
        %973 = vmatprep.mubr.bf16.mxu0 0
        %974 = vmatmul.mubr.bf16.gmra.mxu0 %v931
        %v975 = vpop.f32.mrf.mxu0
        %v976 = vadd.f32 %v888, %v975
        %v977 = vpop.f32.mrf.mxu0
        %v978 = vpop.f32.mrf.mxu0
        %v979 = vadd.f32 %v888, %v978
        %v980 = vpop.f32.mrf.mxu0
        %981 = vdwg.mxu0
        %v982 = vmax.f32 %v968, 0.0
        %v983 = vmax.f32 %v971, 0.0
        %v984 = vmax.f32 %v976, 0.0
        %v985 = vmax.f32 %v979, 0.0
        %986 = vrot.lane.b32.xlu0 %v815, 32
        %v987 = vpop.permute.xlu0 %986
        %988 = vrot.lane.b32.xlu0 %v816, 32
        %v989 = vpop.permute.xlu0 %988
        %990 = vrot.lane.b32.xlu0 %v817, 32
        %v991 = vpop.permute.xlu0 %990
        %992 = vrot.lane.b32.xlu0 %v818, 32
        %v993 = vpop.permute.xlu0 %992
        %1002 = vrot.lane.b32.xlu0 %v823, 64
        %v1003 = vpop.permute.xlu0 %1002
        %1004 = vrot.lane.b32.xlu0 %v824, 64
        %v1005 = vpop.permute.xlu0 %1004
        %1006 = vrot.lane.b32.xlu0 %v825, 64
        %v1007 = vpop.permute.xlu0 %1006
        %1008 = vrot.lane.b32.xlu0 %v826, 64
        %v1009 = vpop.permute.xlu0 %1008
        %v1014 = vsel %vm859, %v807, %v987
        %v1015 = vsel %vm859, %v808, %v989
        %v1016 = vsel %vm859, %v809, %v991
        %v1017 = vsel %vm859, %v810, %v993
        %v1018 = vsel %vm864, %v1014, %v1003
        %v1019 = vsel %vm864, %v1015, %v1005
        %v1020 = vsel %vm864, %v1016, %v1007
        %v1021 = vsel %vm864, %v1017, %v1009
        %v1022 = vpack.c.bf16 %v1019, %v1018
        %v1023 = vpack.c.bf16 %v1021, %v1020
        %v1025 = vsel %vm926, %v1022, 0
        %v1028 = vsel %vm926, %v1023, 0
        %1030 = vmatprep.subr.bf16.mxu0 0
        %1031 = vmatpush1.bf16.msra.mxu0 0
        %1032 = vmatprep.subr.bf16.mxu0 0
        %1033 = vmatpush1.bf16.msra.mxu0 0
        %1034 = vmatprep.subr.bf16.mxu0 0
        %1035 = vmatpush1.bf16.msra.mxu0 %v919
        %1036 = vmatprep.subr.bf16.mxu0 0
        %1037 = vmatpush1.bf16.msra.mxu0 %v918
        %1038 = vmatprep.subr.bf16.mxu0 0
        %1039 = vmatpush1.bf16.msra.mxu0 %v917
        %1040 = vmatprep.subr.bf16.mxu0 0
        %1041 = vmatpush1.bf16.msra.mxu0 %v916
        %1042 = vmatprep.subr.bf16.mxu0 0
        %1043 = vmatpush1.bf16.msra.mxu0 %v915
        %1044 = vmatprep.subr.bf16.mxu0 0
        %1045 = vmatpush1.bf16.msra.mxu0 %v914
        %1046 = vmatprep.subr.bf16.mxu0 0
        %1047 = vmatpush2.bf16.msra.mxu0 0
        %1048 = vmatprep.subr.bf16.mxu0 0
        %1049 = vmatpush2.bf16.msra.mxu0 0
        %1050 = vmatprep.subr.bf16.mxu0 0
        %1051 = vmatpush2.bf16.msra.mxu0 0
        %1052 = vmatprep.subr.bf16.mxu0 0
        %1053 = vmatpush2.bf16.msra.mxu0 0
        %1054 = vmatprep.subr.bf16.mxu0 0
        %1055 = vmatpush2.bf16.msra.mxu0 0
        %1056 = vmatprep.subr.bf16.mxu0 0
        %1057 = vmatpush2.bf16.msra.mxu0 0
        %1058 = vmatprep.subr.bf16.mxu0 0
        %1059 = vmatpush2.bf16.msra.mxu0 0
        %1060 = vmatprep.subr.bf16.mxu0 0
        %1061 = vmatpush2.bf16.msra.mxu0 0
        %1062 = vmatprep.mubr.bf16.mxu0 0
        %1063 = vmatmul.mubr.bf16.gmra.mxu0 %v1025
        %v1064 = vpop.f32.mrf.mxu0
        %v1065 = vadd.f32 %v888, %v1064
        %v1066 = vpop.f32.mrf.mxu0
        %v1067 = vpop.f32.mrf.mxu0
        %v1068 = vadd.f32 %v888, %v1067
        %v1069 = vpop.f32.mrf.mxu0
        %1070 = vmatprep.mubr.bf16.mxu0 0
        %1071 = vmatmul.mubr.bf16.gmra.mxu0 %v1028
        %v1072 = vpop.f32.mrf.mxu0
        %v1073 = vadd.f32 %v888, %v1072
        %v1074 = vpop.f32.mrf.mxu0
        %v1075 = vpop.f32.mrf.mxu0
        %v1076 = vadd.f32 %v888, %v1075
        %v1077 = vpop.f32.mrf.mxu0
        %1078 = vdwg.mxu0
        %v1079 = vmax.f32 %v1065, 0.0
        %v1080 = vmax.f32 %v1068, 0.0
        %v1081 = vmax.f32 %v1073, 0.0
        %v1082 = vmax.f32 %v1076, 0.0
        %v1083 = vmax.f32 %v982, %v1079
        %v1084 = vmax.f32 %v983, %v1080
        %v1085 = vmax.f32 %v984, %v1081
        %v1086 = vmax.f32 %v985, %v1082
        %1087 = vrot.lane.b32.xlu0 %v823, 32
        %v1088 = vpop.permute.xlu0 %1087
        %1089 = vrot.lane.b32.xlu0 %v824, 32
        %v1090 = vpop.permute.xlu0 %1089
        %1091 = vrot.lane.b32.xlu0 %v825, 32
        %v1092 = vpop.permute.xlu0 %1091
        %1093 = vrot.lane.b32.xlu0 %v826, 32
        %v1094 = vpop.permute.xlu0 %1093
        %v1099 = vsel %vm859, %v815, %v1088
        %v1100 = vsel %vm859, %v816, %v1090
        %v1101 = vsel %vm859, %v817, %v1092
        %v1102 = vsel %vm859, %v818, %v1094
        %v1103 = vsel %vm864, %v1099, 0.0
        %v1104 = vsel %vm864, %v1100, 0.0
        %v1105 = vsel %vm864, %v1101, 0.0
        %v1106 = vsel %vm864, %v1102, 0.0
        %v1107 = vpack.c.bf16 %v1104, %v1103
        %v1108 = vpack.c.bf16 %v1106, %v1105
        %v1110 = vsel %vm926, %v1107, 0
        %v1113 = vsel %vm926, %v1108, 0
        %1115 = vmatprep.subr.bf16.mxu0 0
        %1116 = vmatpush1.bf16.msra.mxu0 0
        %1117 = vmatprep.subr.bf16.mxu0 0
        %1118 = vmatpush1.bf16.msra.mxu0 0
        %1119 = vmatprep.subr.bf16.mxu0 0
        %1120 = vmatpush1.bf16.msra.mxu0 %v919
        %1121 = vmatprep.subr.bf16.mxu0 0
        %1122 = vmatpush1.bf16.msra.mxu0 %v918
        %1123 = vmatprep.subr.bf16.mxu0 0
        %1124 = vmatpush1.bf16.msra.mxu0 %v917
        %1125 = vmatprep.subr.bf16.mxu0 0
        %1126 = vmatpush1.bf16.msra.mxu0 %v916
        %1127 = vmatprep.subr.bf16.mxu0 0
        %1128 = vmatpush1.bf16.msra.mxu0 %v915
        %1129 = vmatprep.subr.bf16.mxu0 0
        %1130 = vmatpush1.bf16.msra.mxu0 %v914
        %1131 = vmatprep.subr.bf16.mxu0 0
        %1132 = vmatpush2.bf16.msra.mxu0 0
        %1133 = vmatprep.subr.bf16.mxu0 0
        %1134 = vmatpush2.bf16.msra.mxu0 0
        %1135 = vmatprep.subr.bf16.mxu0 0
        %1136 = vmatpush2.bf16.msra.mxu0 0
        %1137 = vmatprep.subr.bf16.mxu0 0
        %1138 = vmatpush2.bf16.msra.mxu0 0
        %1139 = vmatprep.subr.bf16.mxu0 0
        %1140 = vmatpush2.bf16.msra.mxu0 0
        %1141 = vmatprep.subr.bf16.mxu0 0
        %1142 = vmatpush2.bf16.msra.mxu0 0
        %1143 = vmatprep.subr.bf16.mxu0 0
        %1144 = vmatpush2.bf16.msra.mxu0 0
        %1145 = vmatprep.subr.bf16.mxu0 0
        %1146 = vmatpush2.bf16.msra.mxu0 0
        %1147 = vmatprep.mubr.bf16.mxu0 0
        %1148 = vmatmul.mubr.bf16.gmra.mxu0 %v1110
        %v1149 = vpop.f32.mrf.mxu0
        %v1150 = vadd.f32 %v888, %v1149
        %v1151 = vpop.f32.mrf.mxu0
        %v1152 = vpop.f32.mrf.mxu0
        %v1153 = vadd.f32 %v888, %v1152
        %v1154 = vpop.f32.mrf.mxu0
        %1155 = vmatprep.mubr.bf16.mxu0 0
        %1156 = vmatmul.mubr.bf16.gmra.mxu0 %v1113
        %v1157 = vpop.f32.mrf.mxu0
        %v1158 = vadd.f32 %v888, %v1157
        %v1159 = vpop.f32.mrf.mxu0
        %v1160 = vpop.f32.mrf.mxu0
        %v1161 = vadd.f32 %v888, %v1160
        %v1162 = vpop.f32.mrf.mxu0
        %1163 = vdwg.mxu0
        %v1164 = vmax.f32 %v1150, 0.0
        %v1165 = vmax.f32 %v1153, 0.0
        %v1166 = vmax.f32 %v1158, 0.0
        %v1167 = vmax.f32 %v1161, 0.0
        %v1168 = vmax.f32 %v1083, %v1164
        %v1169 = vmax.f32 %v1084, %v1165
        %v1170 = vmax.f32 %v1085, %v1166
        %v1171 = vmax.f32 %v1086, %v1167
        %v1172 = vpack.c.bf16 %v1169, %v1168
        %v1173 = vpack.c.bf16 %v1171, %v1170
        %v1174 = vld [vmem:[%s5] sm:$0xf]
        %v1175 = vld [vmem:[%s5 + $0x4] sm:$0xf]
        %v1176 = vld [vmem:[%s5 + $0x8] sm:$0xf]
        %v1177 = vld [vmem:[%s5 + $0xc] sm:$0xf]
        %v1178 = vld [vmem:[%s6] sm:$0x1]
        %v1180 = vlaneseq
        %v1181 = vshrl.u32 %v1180, 7
        %v1182 = vsub.s32 0, %v1181
        %v1183 = vrot.slane %v1178, %v1182
        %v1189 = vunpack.c.l.b16 %v1174
        %v1190 = vunpack.c.l.b16 %v1175
        %v1191 = vunpack.c.l.b16 %v1176
        %v1192 = vunpack.c.l.b16 %v1177
        %v1193 = vpack.c.b16 %v1190, %v1189
        %v1194 = vpack.c.b16 %v1192, %v1191
        %v1198 = vsel %vm859, %v1172, 0
        %v1201 = vsel %vm859, %v1173, 0
        %1203 = vmatprep.subr.bf16.mxu0 0
        %1204 = vmatpush1.bf16.msra.mxu0 0
        %1205 = vmatprep.subr.bf16.mxu0 0
        %1206 = vmatpush1.bf16.msra.mxu0 0
        %1207 = vmatprep.subr.bf16.mxu0 0
        %1208 = vmatpush1.bf16.msra.mxu0 0
        %1209 = vmatprep.subr.bf16.mxu0 0
        %1210 = vmatpush1.bf16.msra.mxu0 0
        %1211 = vmatprep.subr.bf16.mxu0 0
        %1212 = vmatpush1.bf16.msra.mxu0 0
        %1213 = vmatprep.subr.bf16.mxu0 0
        %1214 = vmatpush1.bf16.msra.mxu0 0
        %1215 = vmatprep.subr.bf16.mxu0 0
        %1216 = vmatpush1.bf16.msra.mxu0 %v1194
        %1217 = vmatprep.subr.bf16.mxu0 0
        %1218 = vmatpush1.bf16.msra.mxu0 %v1193
        %1219 = vmatprep.subr.bf16.mxu0 0
        %1220 = vmatpush2.bf16.msra.mxu0 0
        %1221 = vmatprep.subr.bf16.mxu0 0
        %1222 = vmatpush2.bf16.msra.mxu0 0
        %1223 = vmatprep.subr.bf16.mxu0 0
        %1224 = vmatpush2.bf16.msra.mxu0 0
        %1225 = vmatprep.subr.bf16.mxu0 0
        %1226 = vmatpush2.bf16.msra.mxu0 0
        %1227 = vmatprep.subr.bf16.mxu0 0
        %1228 = vmatpush2.bf16.msra.mxu0 0
        %1229 = vmatprep.subr.bf16.mxu0 0
        %1230 = vmatpush2.bf16.msra.mxu0 0
        %1231 = vmatprep.subr.bf16.mxu0 0
        %1232 = vmatpush2.bf16.msra.mxu0 0
        %1233 = vmatprep.subr.bf16.mxu0 0
        %1234 = vmatpush2.bf16.msra.mxu0 0
        %1235 = vmatprep.mubr.bf16.mxu0 0
        %1236 = vmatmul.mubr.bf16.gmra.mxu0 %v1198
        %v1237 = vpop.f32.mrf.mxu0
        %v1238 = vadd.f32 %v1183, %v1237
        %v1239 = vpop.f32.mrf.mxu0
        %v1240 = vpop.f32.mrf.mxu0
        %v1241 = vadd.f32 %v1183, %v1240
        %v1242 = vpop.f32.mrf.mxu0
        %1243 = vmatprep.mubr.bf16.mxu0 0
        %1244 = vmatmul.mubr.bf16.gmra.mxu0 %v1201
        %v1245 = vpop.f32.mrf.mxu0
        %v1246 = vadd.f32 %v1183, %v1245
        %v1247 = vpop.f32.mrf.mxu0
        %v1248 = vpop.f32.mrf.mxu0
        %v1249 = vadd.f32 %v1183, %v1248
        %v1250 = vpop.f32.mrf.mxu0
        %1251 = vdwg.mxu0
        %1252 = vst [vmem:[%s455] sm:$0xff] %v1238
        %1253 = vst [vmem:[%s455 + $0x8] sm:$0xff] %v1241
        %1254 = vst [vmem:[%s455 + $0x10] sm:$0xff] %v1246
        %1255 = vst [vmem:[%s455 + $0x18] sm:$0xff] %v1249
        %s1256 = smul.u32 4, %s18
        %p1257 = scmp.lt.s32.totalorder %s1256, 7
        %s1258 = scalar_select %p1257, %s1256, 7
        %s1259 = smul.addr %s1258, 8
        %s1260 = scalar_lea.vmem %s7, %s1259
        // Predicated region
        $region87: #{cnn_tagger_forward.1} parent=81 // pred_check
          %p1261 = pneg %p188
        $region88: #{cnn_tagger_forward.1} parent=81 // pred_check_branch
          %1263 = sbr.rel (%p1261) target = $region90
        $region89: #{cnn_tagger_forward.1} parent=81 // pred_region
          %s1264 = smul.u32 4, %s18
        $region90: #{cnn_tagger_forward.1} parent=81 // pred_fallthru
          _
      $region82: #{cnn_tagger_forward.1} parent=5 // pred_fallthru
        _
      %p1265 = scmp.le.s32.totalorder 2, %s13
      // Predicated region
      $region91: #{cnn_tagger_forward.1} parent=5 // pred_check
        %p1266 = pneg %p1265
      $region92: #{cnn_tagger_forward.1} parent=5 // pred_check_branch
        %1268 = sbr.rel (%p1266) target = $region94
      $region93: #{cnn_tagger_forward.1} parent=5 // pred_region
        %s1269 = ssub.s32 %s13, 2
        // Predicated region
        $region95: #{cnn_tagger_forward.1} parent=93 // pred_check
          %p1270 = pneg %p194
        $region96: #{cnn_tagger_forward.1} parent=93 // pred_check_branch
          %1272 = sbr.rel (%p1270) target = $region98
        $region97: #{cnn_tagger_forward.1} parent=93 // pred_region
          %s1273 = smul.u32 4, %s19
          %p1274 = scmp.lt.s32.totalorder %s1273, 7
          %s1275 = scalar_select %p1274, %s1273, 7
          %s1276 = smul.addr %s1275, 8
          %s1277 = scalar_lea.vmem %s7, %s1276
        $region98: #{cnn_tagger_forward.1} parent=93 // pred_fallthru
          _
      $region94: #{cnn_tagger_forward.1} parent=5 // pred_fallthru
        _
    $region6: #{cnn_tagger_forward.1} parent=1 // loop_footer
      %s17 = sadd.s32 1, %s13
    $region7: #{cnn_tagger_forward.1} parent=1 // loop_footer_branch
      %12 = sbr.rel target = $region3
    $region8: #{cnn_tagger_forward.1} parent=1 // loop_exit
      _

</llo_original>
